<compile_context>
chip_gen: v5e
topology: v5e:2x2
jax: 0.10.0
libtpu: 0.0.40
codegen_flags: <defaults>
</compile_context>

<pallas_src>
import functools

import jax
import jax.numpy as jnp
from jax import lax
from jax.experimental import pallas as pl
from jax.experimental.pallas import tpu as pltpu

NUM_GROUPS = 32
EPS = 1e-6


def attn_block_kernel(x_ref, gamma_ref, beta_ref,
                      wq_ref, bq_ref, wk_ref, bk_ref,
                      wv_ref, bv_ref, wp_ref, bp_ref,
                      gavg_ref, o_ref,
                      q_scr, k_scr, v_scr, *, tq):
    """grid = (B, HW // TQ).

    x_ref:     (1, HW, C) f32   full input for current batch element (resident
                                across the query-tile axis)
    gamma/beta:(1, C)   f32     GroupNorm affine params
    w*_ref:    (C, C)   bf16    1x1-conv weights, PRE-TRANSPOSED to (in, out);
                                wq already carries the 1/sqrt(C) attention scale
    b*_ref:    (1, C)   f32     1x1-conv biases (bq pre-scaled by 1/sqrt(C))
    gavg_ref:  (C, C)   f32     block-diagonal group-averaging matrix
                                (entries 1/(HW*Cg) for same-group channel pairs)
    o_ref:     (1, TQ, C) f32   output tile
    q/k/v_scr: (HW, C)  bf16    per-batch resident projections
    """
    qt = pl.program_id(1)

    # ---- once per batch element: GroupNorm + q/k/v projections into scratch ----
    @pl.when(qt == 0)
    def _():
        x = x_ref[0]                                               # (HW, C) f32

        # GroupNorm(32, C, eps=1e-6): per-channel column sums, then a single
        # full-lane-width (1,C)@(C,C) matmul broadcasts group stats to channels.
        col_sum = jnp.sum(x, axis=0, keepdims=True)                # (1, C)
        mean_c = jnp.dot(col_sum, gavg_ref[...],
                         preferred_element_type=jnp.float32)       # (1, C)
        centered = x - mean_c                                      # (HW, C)
        col_sq = jnp.sum(centered * centered, axis=0, keepdims=True)
        var_c = jnp.dot(col_sq, gavg_ref[...],
                        preferred_element_type=jnp.float32)        # (1, C)
        # Fold gamma into the rsqrt scale -> single fused mul-add over (HW, C).
        scale_c = gamma_ref[...] * lax.rsqrt(var_c + EPS)          # (1, C)
        h = centered * scale_c + beta_ref[...]                     # (HW, C) f32

        hb = h.astype(jnp.bfloat16)

        q = jnp.dot(hb, wq_ref[...],
                    preferred_element_type=jnp.float32) + bq_ref[...]
        q_scr[...] = q.astype(jnp.bfloat16)                        # 1/sqrt(C) pre-folded
        k = jnp.dot(hb, wk_ref[...],
                    preferred_element_type=jnp.float32) + bk_ref[...]
        k_scr[...] = k.astype(jnp.bfloat16)
        v = jnp.dot(hb, wv_ref[...],
                    preferred_element_type=jnp.float32) + bv_ref[...]
        v_scr[...] = v.astype(jnp.bfloat16)

    # ---- per query tile: attention + projection + residual ----
    start = pl.multiple_of(qt * tq, tq)
    q_tile = q_scr[pl.ds(start, tq), :]                            # (TQ, C) bf16

    # scores: (TQ, C) x (HW, C) contracting on C (no k transpose materialized)
    s = lax.dot_general(q_tile, k_scr[...],
                        dimension_numbers=(((1,), (1,)), ((), ())),
                        preferred_element_type=jnp.float32)        # (TQ, HW)
    m = jnp.max(s, axis=-1, keepdims=True)
    p = jnp.exp(s - m)                                             # unnormalized
    row_sum = jnp.sum(p, axis=-1, keepdims=True)                   # (TQ, 1)

    att = jnp.dot(p.astype(jnp.bfloat16), v_scr[...],
                  preferred_element_type=jnp.float32)              # (TQ, C)
    att = att * pl.reciprocal(row_sum, approx=True)                # normalize post-PV

    proj = jnp.dot(att.astype(jnp.bfloat16), wp_ref[...],
                   preferred_element_type=jnp.float32) + bp_ref[...]

    x_tile = x_ref[0, pl.ds(start, tq), :]                         # residual (f32)
    o_ref[0] = (x_tile + proj).astype(o_ref.dtype)


def _pick_tq(hw, requested=None):
    if requested is not None:
        assert hw % requested == 0, "HW must be divisible by the query tile"
        return requested
    for t in (256, 128, 64, 32, 16, 8):
        if hw % t == 0:
            return t
    return hw


def attn_block(x_nchw, params, tq=None):
    """x_nchw: (B, C, H, W) float32. Returns (B, C, H, W) float32."""
    B, C, H, W = x_nchw.shape
    HW = H * W
    assert C % NUM_GROUPS == 0, "GroupNorm(32, C) requires C % 32 == 0"
    tq = _pick_tq(HW, tq)
    n_q_tiles = HW // tq

    # NCHW -> (B, HW, C): channels on the lane axis inside the kernel.
    x = jnp.transpose(x_nchw.reshape(B, C, HW), (0, 2, 1)).astype(jnp.float32)

    # Block-diagonal group-averaging matrix: gavg[i, j] = [group(i)==group(j)] / (HW*Cg)
    cg = C // NUM_GROUPS
    gid = jnp.arange(C) // cg
    gavg = (gid[:, None] == gid[None, :]).astype(jnp.float32) / float(HW * cg)

    gamma = params["gamma"].reshape(1, C).astype(jnp.float32)
    beta = params["beta"].reshape(1, C).astype(jnp.float32)
    scale = jnp.float32(C ** -0.5)
    # Pre-transpose conv weights to (in, out) and cast to bf16 (MXU operands).
    # The 1/sqrt(C) attention scale is folded into wq / bq on the host.
    wq_t = (params["wq"].T * scale).astype(jnp.bfloat16)
    wk_t = params["wk"].T.astype(jnp.bfloat16)
    wv_t = params["wv"].T.astype(jnp.bfloat16)
    wp_t = params["wp"].T.astype(jnp.bfloat16)
    bq = (params["bq"].reshape(1, C) * scale).astype(jnp.float32)
    bk = params["bk"].reshape(1, C).astype(jnp.float32)
    bv = params["bv"].reshape(1, C).astype(jnp.float32)
    bp = params["bp"].reshape(1, C).astype(jnp.float32)

    full2d = lambda b, q: (0, 0)

    kernel = functools.partial(attn_block_kernel, tq=tq)

    cost = pl.CostEstimate(
        flops=int(B * (8 * HW * C * C + 4 * HW * HW * C)),
        transcendentals=int(B * HW * HW),
        bytes_accessed=int(2 * B * HW * C * 4 + 4 * C * C * 2 + 8 * C * 4),
    )

    out = pl.pallas_call(
        kernel,
        out_shape=jax.ShapeDtypeStruct((B, HW, C), jnp.float32),
        grid_spec=pltpu.PrefetchScalarGridSpec(
            num_scalar_prefetch=0,
            grid=(B, n_q_tiles),
            in_specs=[
                # x stays resident across the query-tile axis (same block index).
                pl.BlockSpec((1, HW, C), lambda b, q: (b, 0, 0)),   # x
                pl.BlockSpec((1, C), full2d),                       # gamma
                pl.BlockSpec((1, C), full2d),                       # beta
                pl.BlockSpec((C, C), full2d),                       # wq^T * 1/sqrt(C) (bf16)
                pl.BlockSpec((1, C), full2d),                       # bq * 1/sqrt(C)
                pl.BlockSpec((C, C), full2d),                       # wk^T (bf16)
                pl.BlockSpec((1, C), full2d),                       # bk
                pl.BlockSpec((C, C), full2d),                       # wv^T (bf16)
                pl.BlockSpec((1, C), full2d),                       # bv
                pl.BlockSpec((C, C), full2d),                       # wp^T (bf16)
                pl.BlockSpec((1, C), full2d),                       # bp
                pl.BlockSpec((C, C), full2d),                       # gavg
            ],
            out_specs=pl.BlockSpec((1, tq, C), lambda b, q: (b, q, 0)),
            scratch_shapes=[
                pltpu.VMEM((HW, C), jnp.bfloat16),   # q (scale pre-folded)
                pltpu.VMEM((HW, C), jnp.bfloat16),   # k
                pltpu.VMEM((HW, C), jnp.bfloat16),   # v
            ],
        ),
        compiler_params=pltpu.CompilerParams(
            # batch is independent; query-tile axis carries the resident
            # q/k/v scratch so it must be "arbitrary" (sequential).
            dimension_semantics=("parallel", "arbitrary"),
            vmem_limit_bytes=64 * 1024 * 1024,
        ),
        cost_estimate=cost,
    )(x, gamma, beta, wq_t, bq, wk_t, bk, wv_t, bv, wp_t, bp, gavg)

    # (B, HW, C) -> NCHW
    return jnp.transpose(out, (0, 2, 1)).reshape(B, C, H, W)


def attn_block_ref(x_nchw, params):
    """Pure-JAX f32 reference (mirrors the PyTorch AttnBlock forward)."""
    B, C, H, W = x_nchw.shape
    HW = H * W
    x = x_nchw.astype(jnp.float32)
    xg = x.reshape(B, NUM_GROUPS, C // NUM_GROUPS, HW)
    mean = xg.mean(axis=(2, 3), keepdims=True)
    var = ((xg - mean) ** 2).mean(axis=(2, 3), keepdims=True)
    h = ((xg - mean) * lax.rsqrt(var + EPS)).reshape(B, C, HW)
    h = h * params["gamma"][None, :, None] + params["beta"][None, :, None]
    hT = jnp.transpose(h, (0, 2, 1))                        # (B, HW, C)
    q = hT @ params["wq"].T + params["bq"]
    k = hT @ params["wk"].T + params["bk"]
    v = hT @ params["wv"].T + params["bv"]
    s = jnp.einsum("bqc,bkc->bqk", q, k) * (C ** -0.5)
    p = jax.nn.softmax(s, axis=-1)
    att = jnp.einsum("bqk,bkc->bqc", p, v)
    proj = att @ params["wp"].T + params["bp"]
    return x + jnp.transpose(proj, (0, 2, 1)).reshape(B, C, H, W)


def init_params(key, c):
    """Deterministic synthetic parameters matching AttnBlock(in_channels=c)."""
    ks = jax.random.split(key, 10)
    s = 0.02
    return {
        "gamma": 1.0 + 0.1 * jax.random.normal(ks[0], (c,), jnp.float32),
        "beta": 0.1 * jax.random.normal(ks[1], (c,), jnp.float32),
        # conv 1x1 weights stored as (out_channels, in_channels)
        "wq": s * jax.random.normal(ks[2], (c, c), jnp.float32),
        "bq": s * jax.random.normal(ks[3], (c,), jnp.float32),
        "wk": s * jax.random.normal(ks[4], (c, c), jnp.float32),
        "bk": s * jax.random.normal(ks[5], (c,), jnp.float32),
        "wv": s * jax.random.normal(ks[6], (c, c), jnp.float32),
        "bv": s * jax.random.normal(ks[7], (c,), jnp.float32),
        "wp": s * jax.random.normal(ks[8], (c, c), jnp.float32),
        "bp": s * jax.random.normal(ks[9], (c,), jnp.float32),
    }


if __name__ == "__main__":
    key = jax.random.PRNGKey(0)
    k_x, k_p = jax.random.split(key)

    B, C, H, W = 2, 64, 16, 16   # C must be a multiple of 32 for GroupNorm(32, C)
    x = jax.random.normal(k_x, (B, C, H, W), jnp.float32)
    params = init_params(k_p, C)

    # tq=128 -> 2 query tiles per batch element, exercising the resident
    # k/v-scratch path at this small test size (default tq would be 256).
    out = attn_block(x, params, tq=128)
    jax.block_until_ready(out)
    assert out.shape == (B, C, H, W)

    ref = attn_block_ref(x, params)
    max_err = float(jnp.max(jnp.abs(out - ref)))
    assert max_err < 3e-2, f"max abs err {max_err}"

    print("KERNEL_OK")
</pallas_src>

<mosaic_0001>
module attributes {stable_mosaic.version = 11 : i64} {
  func.func @attn_block_kernel(%arg0: i32, %arg1: i32, %arg2: memref<1x256x64xf32, #tpu.memory_space<vmem>>, %arg3: memref<1x64xf32, #tpu.memory_space<vmem>>, %arg4: memref<1x64xf32, #tpu.memory_space<vmem>>, %arg5: memref<64x64xbf16, #tpu.memory_space<vmem>>, %arg6: memref<1x64xf32, #tpu.memory_space<vmem>>, %arg7: memref<64x64xbf16, #tpu.memory_space<vmem>>, %arg8: memref<1x64xf32, #tpu.memory_space<vmem>>, %arg9: memref<64x64xbf16, #tpu.memory_space<vmem>>, %arg10: memref<1x64xf32, #tpu.memory_space<vmem>>, %arg11: memref<64x64xbf16, #tpu.memory_space<vmem>>, %arg12: memref<1x64xf32, #tpu.memory_space<vmem>>, %arg13: memref<64x64xf32, #tpu.memory_space<vmem>>, %arg14: memref<1x128x64xf32, #tpu.memory_space<vmem>>, %arg15: memref<256x64xbf16, #tpu.memory_space<vmem>>, %arg16: memref<256x64xbf16, #tpu.memory_space<vmem>>, %arg17: memref<256x64xbf16, #tpu.memory_space<vmem>>) attributes {dimension_semantics = [#tpu.dimension_semantics<parallel>, #tpu.dimension_semantics<arbitrary>], iteration_bounds = array<i64: 2, 2>, scalar_prefetch = 0 : i64, scratch_operands = 3 : i64, tpu.core_type = #tpu.core_type<tc>, window_params = [{transform_indices = @transform_0, window_bounds = array<i64: 1, 256, 64>}, {pipeline_mode = #tpu.pipeline_mode<synchronous>, transform_indices = @transform_1, window_bounds = array<i64: 1, 64>}, {pipeline_mode = #tpu.pipeline_mode<synchronous>, transform_indices = @transform_2, window_bounds = array<i64: 1, 64>}, {pipeline_mode = #tpu.pipeline_mode<synchronous>, transform_indices = @transform_3, window_bounds = array<i64: 64, 64>}, {pipeline_mode = #tpu.pipeline_mode<synchronous>, transform_indices = @transform_4, window_bounds = array<i64: 1, 64>}, {pipeline_mode = #tpu.pipeline_mode<synchronous>, transform_indices = @transform_5, window_bounds = array<i64: 64, 64>}, {pipeline_mode = #tpu.pipeline_mode<synchronous>, transform_indices = @transform_6, window_bounds = array<i64: 1, 64>}, {pipeline_mode = #tpu.pipeline_mode<synchronous>, transform_indices = @transform_7, window_bounds = array<i64: 64, 64>}, {pipeline_mode = #tpu.pipeline_mode<synchronous>, transform_indices = @transform_8, window_bounds = array<i64: 1, 64>}, {pipeline_mode = #tpu.pipeline_mode<synchronous>, transform_indices = @transform_9, window_bounds = array<i64: 64, 64>}, {pipeline_mode = #tpu.pipeline_mode<synchronous>, transform_indices = @transform_10, window_bounds = array<i64: 1, 64>}, {pipeline_mode = #tpu.pipeline_mode<synchronous>, transform_indices = @transform_11, window_bounds = array<i64: 64, 64>}, {transform_indices = @transform_12, window_bounds = array<i64: 1, 128, 64>}]} {
    %c0_i32 = arith.constant 0 : i32
    %0 = arith.cmpi eq, %arg1, %c0_i32 : i32
    %1 = arith.extui %0 : i1 to i32
    %c0_i32_0 = arith.constant 0 : i32
    %2 = arith.cmpi ne, %1, %c0_i32_0 : i32
    scf.if %2 {
      %c0_18 = arith.constant 0 : index
      %c0_19 = arith.constant 0 : index
      %c0_20 = arith.constant 0 : index
      %35 = vector.load %arg2[%c0_18, %c0_19, %c0_20] : memref<1x256x64xf32, #tpu.memory_space<vmem>>, vector<1x256x64xf32>
      %36 = vector.shape_cast %35 : vector<1x256x64xf32> to vector<256x64xf32>
      %cst_21 = arith.constant dense<0.000000e+00> : vector<64xf32>
      %37 = vector.multi_reduction <add>, %36, %cst_21 [0] : vector<256x64xf32> to vector<64xf32>
      %38 = vector.shape_cast %37 : vector<64xf32> to vector<1x64xf32>
      %c0_22 = arith.constant 0 : index
      %c0_23 = arith.constant 0 : index
      %39 = vector.load %arg13[%c0_22, %c0_23] : memref<64x64xf32, #tpu.memory_space<vmem>>, vector<64x64xf32>
      %cst_24 = arith.constant dense<0.000000e+00> : vector<1x64xf32>
      %40 = tpu.matmul %38, %39, %cst_24 {dimension_numbers = #tpu.dot_dimension_numbers<[1], [0], [0], [1], [0, 0, 1, 1], [], []>} : vector<1x64xf32>, vector<64x64xf32>, vector<1x64xf32> -> vector<1x64xf32>
      %41 = vector.broadcast %40 : vector<1x64xf32> to vector<256x64xf32>
      %42 = arith.subf %36, %41 : vector<256x64xf32>
      %43 = arith.mulf %42, %42 : vector<256x64xf32>
      %cst_25 = arith.constant dense<0.000000e+00> : vector<64xf32>
      %44 = vector.multi_reduction <add>, %43, %cst_25 [0] : vector<256x64xf32> to vector<64xf32>
      %45 = vector.shape_cast %44 : vector<64xf32> to vector<1x64xf32>
      %c0_26 = arith.constant 0 : index
      %c0_27 = arith.constant 0 : index
      %46 = vector.load %arg13[%c0_26, %c0_27] : memref<64x64xf32, #tpu.memory_space<vmem>>, vector<64x64xf32>
      %cst_28 = arith.constant dense<0.000000e+00> : vector<1x64xf32>
      %47 = tpu.matmul %45, %46, %cst_28 {dimension_numbers = #tpu.dot_dimension_numbers<[1], [0], [0], [1], [0, 0, 1, 1], [], []>} : vector<1x64xf32>, vector<64x64xf32>, vector<1x64xf32> -> vector<1x64xf32>
      %c0_29 = arith.constant 0 : index
      %c0_30 = arith.constant 0 : index
      %48 = vector.load %arg3[%c0_29, %c0_30] : memref<1x64xf32, #tpu.memory_space<vmem>>, vector<1x64xf32>
      %cst_31 = arith.constant 9.99999997E-7 : f32
      %49 = vector.broadcast %cst_31 : f32 to vector<1x64xf32>
      %50 = arith.addf %47, %49 : vector<1x64xf32>
      %51 = math.rsqrt %50 : vector<1x64xf32>
      %52 = arith.mulf %48, %51 : vector<1x64xf32>
      %53 = vector.broadcast %52 : vector<1x64xf32> to vector<256x64xf32>
      %54 = arith.mulf %42, %53 : vector<256x64xf32>
      %c0_32 = arith.constant 0 : index
      %c0_33 = arith.constant 0 : index
      %55 = vector.load %arg4[%c0_32, %c0_33] : memref<1x64xf32, #tpu.memory_space<vmem>>, vector<1x64xf32>
      %56 = vector.broadcast %55 : vector<1x64xf32> to vector<256x64xf32>
      %57 = arith.addf %54, %56 : vector<256x64xf32>
      %58 = arith.truncf %57 : vector<256x64xf32> to vector<256x64xbf16>
      %c0_34 = arith.constant 0 : index
      %c0_35 = arith.constant 0 : index
      %59 = vector.load %arg5[%c0_34, %c0_35] : memref<64x64xbf16, #tpu.memory_space<vmem>>, vector<64x64xbf16>
      %cst_36 = arith.constant dense<0.000000e+00> : vector<256x64xf32>
      %60 = tpu.matmul %58, %59, %cst_36 {dimension_numbers = #tpu.dot_dimension_numbers<[1], [0], [0], [1], [0, 0, 1, 1], [], []>} : vector<256x64xbf16>, vector<64x64xbf16>, vector<256x64xf32> -> vector<256x64xf32>
      %c0_37 = arith.constant 0 : index
      %c0_38 = arith.constant 0 : index
      %61 = vector.load %arg6[%c0_37, %c0_38] : memref<1x64xf32, #tpu.memory_space<vmem>>, vector<1x64xf32>
      %62 = vector.broadcast %61 : vector<1x64xf32> to vector<256x64xf32>
      %63 = arith.addf %60, %62 : vector<256x64xf32>
      %64 = arith.truncf %63 : vector<256x64xf32> to vector<256x64xbf16>
      %c0_39 = arith.constant 0 : index
      %c0_40 = arith.constant 0 : index
      %65 = vector.load %arg15[%c0_39, %c0_40] : memref<256x64xbf16, #tpu.memory_space<vmem>>, vector<256x64xbf16>
      tpu.vector_store %arg15[%c0_39, %c0_40], %64 {strides = array<i32>} : memref<256x64xbf16, #tpu.memory_space<vmem>>, vector<256x64xbf16>,
      %c0_41 = arith.constant 0 : index
      %c0_42 = arith.constant 0 : index
      %66 = vector.load %arg7[%c0_41, %c0_42] : memref<64x64xbf16, #tpu.memory_space<vmem>>, vector<64x64xbf16>
      %cst_43 = arith.constant dense<0.000000e+00> : vector<256x64xf32>
      %67 = tpu.matmul %58, %66, %cst_43 {dimension_numbers = #tpu.dot_dimension_numbers<[1], [0], [0], [1], [0, 0, 1, 1], [], []>} : vector<256x64xbf16>, vector<64x64xbf16>, vector<256x64xf32> -> vector<256x64xf32>
      %c0_44 = arith.constant 0 : index
      %c0_45 = arith.constant 0 : index
      %68 = vector.load %arg8[%c0_44, %c0_45] : memref<1x64xf32, #tpu.memory_space<vmem>>, vector<1x64xf32>
      %69 = vector.broadcast %68 : vector<1x64xf32> to vector<256x64xf32>
      %70 = arith.addf %67, %69 : vector<256x64xf32>
      %71 = arith.truncf %70 : vector<256x64xf32> to vector<256x64xbf16>
      %c0_46 = arith.constant 0 : index
      %c0_47 = arith.constant 0 : index
      %72 = vector.load %arg16[%c0_46, %c0_47] : memref<256x64xbf16, #tpu.memory_space<vmem>>, vector<256x64xbf16>
      tpu.vector_store %arg16[%c0_46, %c0_47], %71 {strides = array<i32>} : memref<256x64xbf16, #tpu.memory_space<vmem>>, vector<256x64xbf16>,
      %c0_48 = arith.constant 0 : index
      %c0_49 = arith.constant 0 : index
      %73 = vector.load %arg9[%c0_48, %c0_49] : memref<64x64xbf16, #tpu.memory_space<vmem>>, vector<64x64xbf16>
      %cst_50 = arith.constant dense<0.000000e+00> : vector<256x64xf32>
      %74 = tpu.matmul %58, %73, %cst_50 {dimension_numbers = #tpu.dot_dimension_numbers<[1], [0], [0], [1], [0, 0, 1, 1], [], []>} : vector<256x64xbf16>, vector<64x64xbf16>, vector<256x64xf32> -> vector<256x64xf32>
      %c0_51 = arith.constant 0 : index
      %c0_52 = arith.constant 0 : index
      %75 = vector.load %arg10[%c0_51, %c0_52] : memref<1x64xf32, #tpu.memory_space<vmem>>, vector<1x64xf32>
      %76 = vector.broadcast %75 : vector<1x64xf32> to vector<256x64xf32>
      %77 = arith.addf %74, %76 : vector<256x64xf32>
      %78 = arith.truncf %77 : vector<256x64xf32> to vector<256x64xbf16>
      %c0_53 = arith.constant 0 : index
      %c0_54 = arith.constant 0 : index
      %79 = vector.load %arg17[%c0_53, %c0_54] : memref<256x64xbf16, #tpu.memory_space<vmem>>, vector<256x64xbf16>
      tpu.vector_store %arg17[%c0_53, %c0_54], %78 {strides = array<i32>} : memref<256x64xbf16, #tpu.memory_space<vmem>>, vector<256x64xbf16>,
    } else {
    }
    %c128_i32 = arith.constant 128 : i32
    %3 = arith.muli %arg1, %c128_i32 : i32
    %4 = tpu.assume_multiple %3, 128 : i32
    %5 = arith.index_cast %4 : i32 to index
    %c0 = arith.constant 0 : index
    %6 = vector.load %arg15[%5, %c0] : memref<256x64xbf16, #tpu.memory_space<vmem>>, vector<128x64xbf16>
    %c0_1 = arith.constant 0 : index
    %c0_2 = arith.constant 0 : index
    %7 = vector.load %arg16[%c0_1, %c0_2] : memref<256x64xbf16, #tpu.memory_space<vmem>>, vector<256x64xbf16>
    %cst = arith.constant dense<0.000000e+00> : vector<128x256xf32>
    %8 = tpu.matmul %6, %7, %cst {dimension_numbers = #tpu.dot_dimension_numbers<[1], [1], [0], [0], [0, 0, 1, 0], [], []>} : vector<128x64xbf16>, vector<256x64xbf16>, vector<128x256xf32> -> vector<128x256xf32>
    %cst_3 = arith.constant dense<0xFF800000> : vector<128xf32>
    %9 = vector.multi_reduction <maximumf>, %8, %cst_3 [1] : vector<128x256xf32> to vector<128xf32>
    %10 = vector.shape_cast %9 : vector<128xf32> to vector<128x1xf32>
    %11 = vector.broadcast %10 : vector<128x1xf32> to vector<128x256xf32>
    %12 = arith.subf %8, %11 : vector<128x256xf32>
    %13 = math.exp %12 : vector<128x256xf32>
    %cst_4 = arith.constant dense<0.000000e+00> : vector<128xf32>
    %14 = vector.multi_reduction <add>, %13, %cst_4 [1] : vector<128x256xf32> to vector<128xf32>
    %15 = vector.shape_cast %14 : vector<128xf32> to vector<128x1xf32>
    %16 = arith.truncf %13 : vector<128x256xf32> to vector<128x256xbf16>
    %c0_5 = arith.constant 0 : index
    %c0_6 = arith.constant 0 : index
    %17 = vector.load %arg17[%c0_5, %c0_6] : memref<256x64xbf16, #tpu.memory_space<vmem>>, vector<256x64xbf16>
    %cst_7 = arith.constant dense<0.000000e+00> : vector<128x64xf32>
    %18 = tpu.matmul %16, %17, %cst_7 {dimension_numbers = #tpu.dot_dimension_numbers<[1], [0], [0], [1], [0, 0, 1, 1], [], []>} : vector<128x256xbf16>, vector<256x64xbf16>, vector<128x64xf32> -> vector<128x64xf32>
    %19 = tpu.reciprocal %15 {approx = true} : vector<128x1xf32> -> vector<128x1xf32>
    %20 = vector.broadcast %19 : vector<128x1xf32> to vector<128x64xf32>
    %21 = arith.mulf %18, %20 : vector<128x64xf32>
    %22 = arith.truncf %21 : vector<128x64xf32> to vector<128x64xbf16>
    %c0_8 = arith.constant 0 : index
    %c0_9 = arith.constant 0 : index
    %23 = vector.load %arg11[%c0_8, %c0_9] : memref<64x64xbf16, #tpu.memory_space<vmem>>, vector<64x64xbf16>
    %cst_10 = arith.constant dense<0.000000e+00> : vector<128x64xf32>
    %24 = tpu.matmul %22, %23, %cst_10 {dimension_numbers = #tpu.dot_dimension_numbers<[1], [0], [0], [1], [0, 0, 1, 1], [], []>} : vector<128x64xbf16>, vector<64x64xbf16>, vector<128x64xf32> -> vector<128x64xf32>
    %c0_11 = arith.constant 0 : index
    %c0_12 = arith.constant 0 : index
    %25 = vector.load %arg12[%c0_11, %c0_12] : memref<1x64xf32, #tpu.memory_space<vmem>>, vector<1x64xf32>
    %26 = vector.broadcast %25 : vector<1x64xf32> to vector<128x64xf32>
    %27 = arith.addf %24, %26 : vector<128x64xf32>
    %c0_13 = arith.constant 0 : index
    %28 = arith.index_cast %4 : i32 to index
    %c0_14 = arith.constant 0 : index
    %29 = vector.load %arg2[%c0_13, %28, %c0_14] : memref<1x256x64xf32, #tpu.memory_space<vmem>>, vector<1x128x64xf32>
    %30 = vector.shape_cast %29 : vector<1x128x64xf32> to vector<128x64xf32>
    %31 = arith.addf %30, %27 : vector<128x64xf32>
    %c0_15 = arith.constant 0 : index
    %c0_16 = arith.constant 0 : index
    %c0_17 = arith.constant 0 : index
    %32 = vector.load %arg14[%c0_15, %c0_16, %c0_17] : memref<1x128x64xf32, #tpu.memory_space<vmem>>, vector<1x128x64xf32>
    %33 = vector.shape_cast %32 : vector<1x128x64xf32> to vector<128x64xf32>
    %34 = vector.shape_cast %31 : vector<128x64xf32> to vector<1x128x64xf32>
    tpu.vector_store %arg14[%c0_15, %c0_16, %c0_17], %34 {strides = array<i32>} : memref<1x128x64xf32, #tpu.memory_space<vmem>>, vector<1x128x64xf32>,
    return
  }
  func.func @transform_0(%arg0: i32, %arg1: i32) -> (i32, i32, i32) {
    %c0_i32 = arith.constant 0 : i32
    %c0_i32_0 = arith.constant 0 : i32
    %c0_i32_1 = arith.constant 0 : i32
    return %arg0, %c0_i32, %c0_i32_0 : i32, i32, i32
  }
  func.func @transform_1(%arg0: i32, %arg1: i32) -> (i32, i32) {
    %c0_i32 = arith.constant 0 : i32
    %c0_i32_0 = arith.constant 0 : i32
    %c0_i32_1 = arith.constant 0 : i32
    return %c0_i32, %c0_i32_0 : i32, i32
  }
  func.func @transform_2(%arg0: i32, %arg1: i32) -> (i32, i32) {
    %c0_i32 = arith.constant 0 : i32
    %c0_i32_0 = arith.constant 0 : i32
    %c0_i32_1 = arith.constant 0 : i32
    return %c0_i32, %c0_i32_0 : i32, i32
  }
  func.func @transform_3(%arg0: i32, %arg1: i32) -> (i32, i32) {
    %c0_i32 = arith.constant 0 : i32
    %c0_i32_0 = arith.constant 0 : i32
    %c0_i32_1 = arith.constant 0 : i32
    return %c0_i32, %c0_i32_0 : i32, i32
  }
  func.func @transform_4(%arg0: i32, %arg1: i32) -> (i32, i32) {
    %c0_i32 = arith.constant 0 : i32
    %c0_i32_0 = arith.constant 0 : i32
    %c0_i32_1 = arith.constant 0 : i32
    return %c0_i32, %c0_i32_0 : i32, i32
  }
  func.func @transform_5(%arg0: i32, %arg1: i32) -> (i32, i32) {
    %c0_i32 = arith.constant 0 : i32
    %c0_i32_0 = arith.constant 0 : i32
    %c0_i32_1 = arith.constant 0 : i32
    return %c0_i32, %c0_i32_0 : i32, i32
  }
  func.func @transform_6(%arg0: i32, %arg1: i32) -> (i32, i32) {
    %c0_i32 = arith.constant 0 : i32
    %c0_i32_0 = arith.constant 0 : i32
    %c0_i32_1 = arith.constant 0 : i32
    return %c0_i32, %c0_i32_0 : i32, i32
  }
  func.func @transform_7(%arg0: i32, %arg1: i32) -> (i32, i32) {
    %c0_i32 = arith.constant 0 : i32
    %c0_i32_0 = arith.constant 0 : i32
    %c0_i32_1 = arith.constant 0 : i32
    return %c0_i32, %c0_i32_0 : i32, i32
  }
  func.func @transform_8(%arg0: i32, %arg1: i32) -> (i32, i32) {
    %c0_i32 = arith.constant 0 : i32
    %c0_i32_0 = arith.constant 0 : i32
    %c0_i32_1 = arith.constant 0 : i32
    return %c0_i32, %c0_i32_0 : i32, i32
  }
  func.func @transform_9(%arg0: i32, %arg1: i32) -> (i32, i32) {
    %c0_i32 = arith.constant 0 : i32
    %c0_i32_0 = arith.constant 0 : i32
    %c0_i32_1 = arith.constant 0 : i32
    return %c0_i32, %c0_i32_0 : i32, i32
  }
  func.func @transform_10(%arg0: i32, %arg1: i32) -> (i32, i32) {
    %c0_i32 = arith.constant 0 : i32
    %c0_i32_0 = arith.constant 0 : i32
    %c0_i32_1 = arith.constant 0 : i32
    return %c0_i32, %c0_i32_0 : i32, i32
  }
  func.func @transform_11(%arg0: i32, %arg1: i32) -> (i32, i32) {
    %c0_i32 = arith.constant 0 : i32
    %c0_i32_0 = arith.constant 0 : i32
    %c0_i32_1 = arith.constant 0 : i32
    return %c0_i32, %c0_i32_0 : i32, i32
  }
  func.func @transform_12(%arg0: i32, %arg1: i32) -> (i32, i32, i32) {
    %c0_i32 = arith.constant 0 : i32
    %c0_i32_0 = arith.constant 0 : i32
    return %arg0, %arg1, %c0_i32 : i32, i32, i32
  }
}

</mosaic_0001>

<llo_original>
// kernel: tpu_custom_call.1
$region0: #{tpu_custom_call.1}
  #allocation0 [shape = 'u32[]', space=smem, size = 0x4, offset = 0x4, fixed_abs, tag = 'smem constant byte address 0x4 - core index']
  #allocation1 [shape = 'u32[72,128]{1,0:T(1,128)}', space=vmem, size = 0x9000, scoped, tag = 'internal scratch']
  #allocation2 [shape = 'bf16[256,64]{1,0:T(8,128)(2,1)}', space=vmem, size = 0x10000, scoped, tag = 'scratch operand']
  #allocation3 [shape = 'bf16[256,64]{1,0:T(8,128)(2,1)}', space=vmem, size = 0x10000, scoped, tag = 'scratch operand']
  #allocation4 [shape = 'bf16[256,64]{1,0:T(8,128)(2,1)}', space=vmem, size = 0x10000, scoped, tag = 'scratch operand']
  %s0 = inlined_call_operand.vmem [shape: f32[2,256,64], index: 0, kind: input, shape index: {}]
  %s1 = inlined_call_operand.vmem [shape: f32[1,64], index: 1, kind: input, shape index: {}]
  %s2 = inlined_call_operand.vmem [shape: f32[1,64], index: 2, kind: input, shape index: {}]
  %s3 = inlined_call_operand.vmem [shape: bf16[64,64], index: 3, kind: input, shape index: {}]
  %s4 = inlined_call_operand.vmem [shape: f32[1,64], index: 4, kind: input, shape index: {}]
  %s5 = inlined_call_operand.vmem [shape: bf16[64,64], index: 5, kind: input, shape index: {}]
  %s6 = inlined_call_operand.vmem [shape: f32[1,64], index: 6, kind: input, shape index: {}]
  %s7 = inlined_call_operand.vmem [shape: bf16[64,64], index: 7, kind: input, shape index: {}]
  %s8 = inlined_call_operand.vmem [shape: f32[1,64], index: 8, kind: input, shape index: {}]
  %s9 = inlined_call_operand.vmem [shape: bf16[64,64], index: 9, kind: input, shape index: {}]
  %s10 = inlined_call_operand.vmem [shape: f32[1,64], index: 10, kind: input, shape index: {}]
  %s11 = inlined_call_operand.vmem [shape: f32[64,64], index: 11, kind: input, shape index: {}]
  %s12 = inlined_call_operand.vmem [shape: f32[2,256,64], index: 12, kind: output, shape index: {}]
  %s13 = sld [smem:[#allocation0]]
  $region85: #{tpu_custom_call.1} parent=0
    _
  %s15 = ssub.s32 1, %s13
  %s16 = scalar_select 0, %s15, %s13
  loop: start=0, step=1, limit=6
  $region2: #{tpu_custom_call.1} parent=0 // loop_pre_header
    _
  $region3: #{tpu_custom_call.1} parent=0 // loop_header
    %s18 = sphi 0, %s22
    %p19 = scmp.ge.s32.totalorder %s18, 6
    %s25 = sphi 0, %s37
    %s26 = sphi 0, %s33
    %s27 = sphi 0, %s25
    %s28 = sphi 0, %s26
    %s29 = sphi 0, %s27
    %s30 = sphi 0, %s28
    %s40 = sphi 0, %s42
    %s43 = sphi 0, %s40
    %s44 = sphi 0, %s43
    %s60 = sphi 0, %s44
    %s64 = sphi 0, %s64
    %s66 = sphi 0, %s64
    %s67 = sphi 0, %s66
    %s81 = sphi 0, %s67
    %s85 = sphi 0, %s85
    %s87 = sphi 0, %s85
    %s88 = sphi 0, %s87
    %s102 = sphi 0, %s88
    %s106 = sphi 0, %s106
    %s108 = sphi 0, %s106
    %s109 = sphi 0, %s108
    %s123 = sphi 0, %s109
    %s127 = sphi 0, %s127
    %s129 = sphi 0, %s127
    %s130 = sphi 0, %s129
    %s144 = sphi 0, %s130
    %s148 = sphi 0, %s148
    %s150 = sphi 0, %s148
    %s151 = sphi 0, %s150
    %s165 = sphi 0, %s151
    %s169 = sphi 0, %s169
    %s171 = sphi 0, %s169
    %s172 = sphi 0, %s171
    %s186 = sphi 0, %s172
    %s190 = sphi 0, %s190
    %s192 = sphi 0, %s190
    %s193 = sphi 0, %s192
    %s207 = sphi 0, %s193
    %s211 = sphi 0, %s211
    %s213 = sphi 0, %s211
    %s214 = sphi 0, %s213
    %s228 = sphi 0, %s214
    %s232 = sphi 0, %s232
    %s234 = sphi 0, %s232
    %s235 = sphi 0, %s234
    %s249 = sphi 0, %s235
    %s253 = sphi 0, %s253
    %s255 = sphi 0, %s253
    %s256 = sphi 0, %s255
    %s270 = sphi 0, %s256
    %s274 = sphi 0, %s274
    %s276 = sphi 0, %s274
    %s277 = sphi 0, %s276
    %s291 = sphi 0, %s277
    %s299 = sphi 0, %s301
    %s302 = sphi 0, %s299
    %s303 = sphi 0, %s302
    %s319 = sphi 0, %s303
  $region4: #{tpu_custom_call.1} parent=0 // loop_header_branch
    %21 = sbr.rel (%p19) target = $region8
  $region5: #{tpu_custom_call.1} parent=0 // loop_body
    %s23 = ssub.s32 %s18, 1
    %s24 = ssub.s32 %s18, 2
    %s31 = sadd.s32 1, %s26
    %p32 = scmp.ge.s32.totalorder %s31, 2
    %s33 = scalar_select %p32, 0, %s31
    %s34 = sadd.s32 1, %s25
    %s35 = scalar_select %p32, %s34, %s25
    %p36 = scmp.ge.s32.totalorder %s35, 2
    %s37 = scalar_select %p36, 0, %s35
    %s38 = ssub.s32 %s25, %s37
    %p39 = scmp.eq.s32.totalorder %s38, 0
    %s41 = sadd.s32 %s40, 1
    %s42 = scalar_select %p39, %s40, %s41
    %p45 = pneg %p39
    %p46 = scmp.eq.s32.totalorder %s18, 3
    %p47 = por %p45, %p46
    %p48 = scmp.ne.s32.totalorder %s40, %s43
    %p49 = scmp.eq.s32.totalorder %s18, 0
    %p50 = por %p48, %p49
    %p51 = scmp.ne.s32.totalorder %s40, %s43
    %p52 = scmp.eq.s32.totalorder %s23, 3
    %p53 = por %p51, %p52
    %p54 = scmp.ne.s32.totalorder %s43, %s44
    %p55 = scmp.eq.s32.totalorder %s23, 0
    %p56 = por %p54, %p55
    %p57 = scmp.ne.s32.totalorder %s43, %s44
    %p58 = scmp.eq.s32.totalorder %s24, 3
    %p59 = por %p57, %p58
    %p61 = scmp.ne.s32.totalorder %s44, %s60
    %p62 = scmp.eq.s32.totalorder %s24, 0
    %p63 = por %p61, %p62
    %s65 = sadd.s32 %s64, 1
    %p68 = scmp.eq.s32.totalorder %s18, 3
    %p69 = scmp.ne.s32.totalorder %s64, %s66
    %p70 = scmp.eq.s32.totalorder %s18, 0
    %p71 = por %p69, %p70
    %p72 = scmp.ne.s32.totalorder %s64, %s66
    %p73 = scmp.eq.s32.totalorder %s23, 3
    %p74 = por %p72, %p73
    %p75 = scmp.ne.s32.totalorder %s66, %s67
    %p76 = scmp.eq.s32.totalorder %s23, 0
    %p77 = por %p75, %p76
    %p78 = scmp.ne.s32.totalorder %s66, %s67
    %p79 = scmp.eq.s32.totalorder %s24, 3
    %p80 = por %p78, %p79
    %p82 = scmp.ne.s32.totalorder %s67, %s81
    %p83 = scmp.eq.s32.totalorder %s24, 0
    %p84 = por %p82, %p83
    %s86 = sadd.s32 %s85, 1
    %p89 = scmp.eq.s32.totalorder %s18, 3
    %p90 = scmp.ne.s32.totalorder %s85, %s87
    %p91 = scmp.eq.s32.totalorder %s18, 0
    %p92 = por %p90, %p91
    %p93 = scmp.ne.s32.totalorder %s85, %s87
    %p94 = scmp.eq.s32.totalorder %s23, 3
    %p95 = por %p93, %p94
    %p96 = scmp.ne.s32.totalorder %s87, %s88
    %p97 = scmp.eq.s32.totalorder %s23, 0
    %p98 = por %p96, %p97
    %p99 = scmp.ne.s32.totalorder %s87, %s88
    %p100 = scmp.eq.s32.totalorder %s24, 3
    %p101 = por %p99, %p100
    %p103 = scmp.ne.s32.totalorder %s88, %s102
    %p104 = scmp.eq.s32.totalorder %s24, 0
    %p105 = por %p103, %p104
    %s107 = sadd.s32 %s106, 1
    %p110 = scmp.eq.s32.totalorder %s18, 3
    %p111 = scmp.ne.s32.totalorder %s106, %s108
    %p112 = scmp.eq.s32.totalorder %s18, 0
    %p113 = por %p111, %p112
    %p114 = scmp.ne.s32.totalorder %s106, %s108
    %p115 = scmp.eq.s32.totalorder %s23, 3
    %p116 = por %p114, %p115
    %p117 = scmp.ne.s32.totalorder %s108, %s109
    %p118 = scmp.eq.s32.totalorder %s23, 0
    %p119 = por %p117, %p118
    %p120 = scmp.ne.s32.totalorder %s108, %s109
    %p121 = scmp.eq.s32.totalorder %s24, 3
    %p122 = por %p120, %p121
    %p124 = scmp.ne.s32.totalorder %s109, %s123
    %p125 = scmp.eq.s32.totalorder %s24, 0
    %p126 = por %p124, %p125
    %s128 = sadd.s32 %s127, 1
    %p131 = scmp.eq.s32.totalorder %s18, 3
    %p132 = scmp.ne.s32.totalorder %s127, %s129
    %p133 = scmp.eq.s32.totalorder %s18, 0
    %p134 = por %p132, %p133
    %p135 = scmp.ne.s32.totalorder %s127, %s129
    %p136 = scmp.eq.s32.totalorder %s23, 3
    %p137 = por %p135, %p136
    %p138 = scmp.ne.s32.totalorder %s129, %s130
    %p139 = scmp.eq.s32.totalorder %s23, 0
    %p140 = por %p138, %p139
    %p141 = scmp.ne.s32.totalorder %s129, %s130
    %p142 = scmp.eq.s32.totalorder %s24, 3
    %p143 = por %p141, %p142
    %p145 = scmp.ne.s32.totalorder %s130, %s144
    %p146 = scmp.eq.s32.totalorder %s24, 0
    %p147 = por %p145, %p146
    %s149 = sadd.s32 %s148, 1
    %p152 = scmp.eq.s32.totalorder %s18, 3
    %p153 = scmp.ne.s32.totalorder %s148, %s150
    %p154 = scmp.eq.s32.totalorder %s18, 0
    %p155 = por %p153, %p154
    %p156 = scmp.ne.s32.totalorder %s148, %s150
    %p157 = scmp.eq.s32.totalorder %s23, 3
    %p158 = por %p156, %p157
    %p159 = scmp.ne.s32.totalorder %s150, %s151
    %p160 = scmp.eq.s32.totalorder %s23, 0
    %p161 = por %p159, %p160
    %p162 = scmp.ne.s32.totalorder %s150, %s151
    %p163 = scmp.eq.s32.totalorder %s24, 3
    %p164 = por %p162, %p163
    %p166 = scmp.ne.s32.totalorder %s151, %s165
    %p167 = scmp.eq.s32.totalorder %s24, 0
    %p168 = por %p166, %p167
    %s170 = sadd.s32 %s169, 1
    %p173 = scmp.eq.s32.totalorder %s18, 3
    %p174 = scmp.ne.s32.totalorder %s169, %s171
    %p175 = scmp.eq.s32.totalorder %s18, 0
    %p176 = por %p174, %p175
    %p177 = scmp.ne.s32.totalorder %s169, %s171
    %p178 = scmp.eq.s32.totalorder %s23, 3
    %p179 = por %p177, %p178
    %p180 = scmp.ne.s32.totalorder %s171, %s172
    %p181 = scmp.eq.s32.totalorder %s23, 0
    %p182 = por %p180, %p181
    %p183 = scmp.ne.s32.totalorder %s171, %s172
    %p184 = scmp.eq.s32.totalorder %s24, 3
    %p185 = por %p183, %p184
    %p187 = scmp.ne.s32.totalorder %s172, %s186
    %p188 = scmp.eq.s32.totalorder %s24, 0
    %p189 = por %p187, %p188
    %s191 = sadd.s32 %s190, 1
    %p194 = scmp.eq.s32.totalorder %s18, 3
    %p195 = scmp.ne.s32.totalorder %s190, %s192
    %p196 = scmp.eq.s32.totalorder %s18, 0
    %p197 = por %p195, %p196
    %p198 = scmp.ne.s32.totalorder %s190, %s192
    %p199 = scmp.eq.s32.totalorder %s23, 3
    %p200 = por %p198, %p199
    %p201 = scmp.ne.s32.totalorder %s192, %s193
    %p202 = scmp.eq.s32.totalorder %s23, 0
    %p203 = por %p201, %p202
    %p204 = scmp.ne.s32.totalorder %s192, %s193
    %p205 = scmp.eq.s32.totalorder %s24, 3
    %p206 = por %p204, %p205
    %p208 = scmp.ne.s32.totalorder %s193, %s207
    %p209 = scmp.eq.s32.totalorder %s24, 0
    %p210 = por %p208, %p209
    %s212 = sadd.s32 %s211, 1
    %p215 = scmp.eq.s32.totalorder %s18, 3
    %p216 = scmp.ne.s32.totalorder %s211, %s213
    %p217 = scmp.eq.s32.totalorder %s18, 0
    %p218 = por %p216, %p217
    %p219 = scmp.ne.s32.totalorder %s211, %s213
    %p220 = scmp.eq.s32.totalorder %s23, 3
    %p221 = por %p219, %p220
    %p222 = scmp.ne.s32.totalorder %s213, %s214
    %p223 = scmp.eq.s32.totalorder %s23, 0
    %p224 = por %p222, %p223
    %p225 = scmp.ne.s32.totalorder %s213, %s214
    %p226 = scmp.eq.s32.totalorder %s24, 3
    %p227 = por %p225, %p226
    %p229 = scmp.ne.s32.totalorder %s214, %s228
    %p230 = scmp.eq.s32.totalorder %s24, 0
    %p231 = por %p229, %p230
    %s233 = sadd.s32 %s232, 1
    %p236 = scmp.eq.s32.totalorder %s18, 3
    %p237 = scmp.ne.s32.totalorder %s232, %s234
    %p238 = scmp.eq.s32.totalorder %s18, 0
    %p239 = por %p237, %p238
    %p240 = scmp.ne.s32.totalorder %s232, %s234
    %p241 = scmp.eq.s32.totalorder %s23, 3
    %p242 = por %p240, %p241
    %p243 = scmp.ne.s32.totalorder %s234, %s235
    %p244 = scmp.eq.s32.totalorder %s23, 0
    %p245 = por %p243, %p244
    %p246 = scmp.ne.s32.totalorder %s234, %s235
    %p247 = scmp.eq.s32.totalorder %s24, 3
    %p248 = por %p246, %p247
    %p250 = scmp.ne.s32.totalorder %s235, %s249
    %p251 = scmp.eq.s32.totalorder %s24, 0
    %p252 = por %p250, %p251
    %s254 = sadd.s32 %s253, 1
    %p257 = scmp.eq.s32.totalorder %s18, 3
    %p258 = scmp.ne.s32.totalorder %s253, %s255
    %p259 = scmp.eq.s32.totalorder %s18, 0
    %p260 = por %p258, %p259
    %p261 = scmp.ne.s32.totalorder %s253, %s255
    %p262 = scmp.eq.s32.totalorder %s23, 3
    %p263 = por %p261, %p262
    %p264 = scmp.ne.s32.totalorder %s255, %s256
    %p265 = scmp.eq.s32.totalorder %s23, 0
    %p266 = por %p264, %p265
    %p267 = scmp.ne.s32.totalorder %s255, %s256
    %p268 = scmp.eq.s32.totalorder %s24, 3
    %p269 = por %p267, %p268
    %p271 = scmp.ne.s32.totalorder %s256, %s270
    %p272 = scmp.eq.s32.totalorder %s24, 0
    %p273 = por %p271, %p272
    %s275 = sadd.s32 %s274, 1
    %p278 = scmp.eq.s32.totalorder %s18, 3
    %p279 = scmp.ne.s32.totalorder %s274, %s276
    %p280 = scmp.eq.s32.totalorder %s18, 0
    %p281 = por %p279, %p280
    %p282 = scmp.ne.s32.totalorder %s274, %s276
    %p283 = scmp.eq.s32.totalorder %s23, 3
    %p284 = por %p282, %p283
    %p285 = scmp.ne.s32.totalorder %s276, %s277
    %p286 = scmp.eq.s32.totalorder %s23, 0
    %p287 = por %p285, %p286
    %p288 = scmp.ne.s32.totalorder %s276, %s277
    %p289 = scmp.eq.s32.totalorder %s24, 3
    %p290 = por %p288, %p289
    %p292 = scmp.ne.s32.totalorder %s277, %s291
    %p293 = scmp.eq.s32.totalorder %s24, 0
    %p294 = por %p292, %p293
    %s295 = ssub.s32 %s25, %s37
    %s296 = ssub.s32 %s26, %s33
    %s297 = sor.u32 %s295, %s296
    %p298 = scmp.eq.s32.totalorder %s297, 0
    %s300 = sadd.s32 %s299, 1
    %s301 = scalar_select %p298, %s299, %s300
    %p304 = pneg %p298
    %p305 = scmp.eq.s32.totalorder %s18, 3
    %p306 = por %p304, %p305
    %p307 = scmp.ne.s32.totalorder %s299, %s302
    %p308 = scmp.eq.s32.totalorder %s18, 0
    %p309 = por %p307, %p308
    %p310 = scmp.ne.s32.totalorder %s299, %s302
    %p311 = scmp.eq.s32.totalorder %s23, 3
    %p312 = por %p310, %p311
    %p313 = scmp.ne.s32.totalorder %s302, %s303
    %p314 = scmp.eq.s32.totalorder %s23, 0
    %p315 = por %p313, %p314
    %p316 = scmp.ne.s32.totalorder %s302, %s303
    %p317 = scmp.eq.s32.totalorder %s24, 3
    %p318 = por %p316, %p317
    %p320 = scmp.ne.s32.totalorder %s303, %s319
    %p321 = scmp.eq.s32.totalorder %s24, 0
    %p322 = por %p320, %p321
    %p323 = scmp.le.s32.totalorder 1, %s18
    %p324 = scmp.lt.s32.totalorder %s18, 5
    %p325 = pnand %p323, %p324
    %p326 = pneg %p325
    // Predicated region
    $region9: #{tpu_custom_call.1} parent=5 // pred_check
      _
    $region10: #{tpu_custom_call.1} parent=5 // pred_check_branch
      %328 = sbr.rel (%p325) target = $region12
    $region11: #{tpu_custom_call.1} parent=5 // pred_region
      %s329 = ssub.s32 %s18, 1
      // Predicated region
      $region13: #{tpu_custom_call.1} parent=11 // pred_check
        %p330 = pneg %p77
      $region14: #{tpu_custom_call.1} parent=11 // pred_check_branch
        %332 = sbr.rel (%p330) target = $region16
      $region15: #{tpu_custom_call.1} parent=11 // pred_region
        _
      $region16: #{tpu_custom_call.1} parent=11 // pred_fallthru
        _
      // Predicated region
      $region17: #{tpu_custom_call.1} parent=11 // pred_check
        %p333 = pneg %p98
      $region18: #{tpu_custom_call.1} parent=11 // pred_check_branch
        %335 = sbr.rel (%p333) target = $region20
      $region19: #{tpu_custom_call.1} parent=11 // pred_region
        _
      $region20: #{tpu_custom_call.1} parent=11 // pred_fallthru
        _
      // Predicated region
      $region21: #{tpu_custom_call.1} parent=11 // pred_check
        %p336 = pneg %p119
      $region22: #{tpu_custom_call.1} parent=11 // pred_check_branch
        %338 = sbr.rel (%p336) target = $region24
      $region23: #{tpu_custom_call.1} parent=11 // pred_region
        _
      $region24: #{tpu_custom_call.1} parent=11 // pred_fallthru
        _
      // Predicated region
      $region25: #{tpu_custom_call.1} parent=11 // pred_check
        %p339 = pneg %p140
      $region26: #{tpu_custom_call.1} parent=11 // pred_check_branch
        %341 = sbr.rel (%p339) target = $region28
      $region27: #{tpu_custom_call.1} parent=11 // pred_region
        _
      $region28: #{tpu_custom_call.1} parent=11 // pred_fallthru
        _
      // Predicated region
      $region29: #{tpu_custom_call.1} parent=11 // pred_check
        %p342 = pneg %p161
      $region30: #{tpu_custom_call.1} parent=11 // pred_check_branch
        %344 = sbr.rel (%p342) target = $region32
      $region31: #{tpu_custom_call.1} parent=11 // pred_region
        _
      $region32: #{tpu_custom_call.1} parent=11 // pred_fallthru
        _
      // Predicated region
      $region33: #{tpu_custom_call.1} parent=11 // pred_check
        %p345 = pneg %p182
      $region34: #{tpu_custom_call.1} parent=11 // pred_check_branch
        %347 = sbr.rel (%p345) target = $region36
      $region35: #{tpu_custom_call.1} parent=11 // pred_region
        _
      $region36: #{tpu_custom_call.1} parent=11 // pred_fallthru
        _
      // Predicated region
      $region37: #{tpu_custom_call.1} parent=11 // pred_check
        %p348 = pneg %p203
      $region38: #{tpu_custom_call.1} parent=11 // pred_check_branch
        %350 = sbr.rel (%p348) target = $region40
      $region39: #{tpu_custom_call.1} parent=11 // pred_region
        _
      $region40: #{tpu_custom_call.1} parent=11 // pred_fallthru
        _
      // Predicated region
      $region41: #{tpu_custom_call.1} parent=11 // pred_check
        %p351 = pneg %p224
      $region42: #{tpu_custom_call.1} parent=11 // pred_check_branch
        %353 = sbr.rel (%p351) target = $region44
      $region43: #{tpu_custom_call.1} parent=11 // pred_region
        _
      $region44: #{tpu_custom_call.1} parent=11 // pred_fallthru
        _
      // Predicated region
      $region45: #{tpu_custom_call.1} parent=11 // pred_check
        %p354 = pneg %p245
      $region46: #{tpu_custom_call.1} parent=11 // pred_check_branch
        %356 = sbr.rel (%p354) target = $region48
      $region47: #{tpu_custom_call.1} parent=11 // pred_region
        _
      $region48: #{tpu_custom_call.1} parent=11 // pred_fallthru
        _
      // Predicated region
      $region49: #{tpu_custom_call.1} parent=11 // pred_check
        %p357 = pneg %p266
      $region50: #{tpu_custom_call.1} parent=11 // pred_check_branch
        %359 = sbr.rel (%p357) target = $region52
      $region51: #{tpu_custom_call.1} parent=11 // pred_region
        _
      $region52: #{tpu_custom_call.1} parent=11 // pred_fallthru
        _
      // Predicated region
      $region53: #{tpu_custom_call.1} parent=11 // pred_check
        %p360 = pneg %p287
      $region54: #{tpu_custom_call.1} parent=11 // pred_check_branch
        %362 = sbr.rel (%p360) target = $region56
      $region55: #{tpu_custom_call.1} parent=11 // pred_region
        _
      $region56: #{tpu_custom_call.1} parent=11 // pred_fallthru
        _
    $region12: #{tpu_custom_call.1} parent=5 // pred_fallthru
      _
    %p363 = scmp.lt.s32.totalorder %s18, 4
    // Predicated region
    $region57: #{tpu_custom_call.1} parent=5 // pred_check
      %p364 = pneg %p363
    $region58: #{tpu_custom_call.1} parent=5 // pred_check_branch
      %366 = sbr.rel (%p364) target = $region60
    $region59: #{tpu_custom_call.1} parent=5 // pred_region
      // Predicated region
      $region61: #{tpu_custom_call.1} parent=59 // pred_check
        %p367 = pneg %p50
      $region62: #{tpu_custom_call.1} parent=59 // pred_check_branch
        %369 = sbr.rel (%p367) target = $region64
      $region63: #{tpu_custom_call.1} parent=59 // pred_region
        %p370 = scmp.lt.s32.totalorder %s25, 1
        %s371 = scalar_select %p370, %s25, 1
        %s372 = smul.addr %s371, 32
        %s373 = smul.addr %s372, 8
        %s374 = scalar_lea.vmem %s0, %s373
      $region64: #{tpu_custom_call.1} parent=59 // pred_fallthru
        _
    $region60: #{tpu_custom_call.1} parent=5 // pred_fallthru
      _
    %p375 = scmp.le.s32.totalorder 1, %s18
    %p376 = scmp.lt.s32.totalorder %s18, 5
    %p377 = pnand %p375, %p376
    %p378 = pneg %p377
    // Predicated region
    $region65: #{tpu_custom_call.1} parent=5 // pred_check
      _
    $region66: #{tpu_custom_call.1} parent=5 // pred_check_branch
      %380 = sbr.rel (%p377) target = $region68
    $region67: #{tpu_custom_call.1} parent=5 // pred_region
      %s381 = ssub.s32 %s18, 1
      %p382 = scmp.lt.s32.totalorder %s27, 1
      %s383 = scalar_select %p382, %s27, 1
      %s384 = smul.addr %s383, 32
      %s385 = smul.addr %s384, 8
      %s386 = scalar_lea.vmem %s0, %s385
      %p387 = pneg %p56
      %p388 = pneg %p53
      %p389 = pneg %p77
      %p390 = pneg %p74
      %p391 = pneg %p98
      %p392 = pneg %p95
      %p393 = pneg %p119
      %p394 = pneg %p116
      %p395 = pneg %p140
      %p396 = pneg %p137
      %p397 = pneg %p161
      %p398 = pneg %p158
      %p399 = pneg %p182
      %p400 = pneg %p179
      %p401 = pneg %p203
      %p402 = pneg %p200
      %p403 = pneg %p224
      %p404 = pneg %p221
      %p405 = pneg %p245
      %p406 = pneg %p242
      %p407 = pneg %p266
      %p408 = pneg %p263
      %p409 = pneg %p287
      %p410 = pneg %p284
      %p411 = pneg %p315
      %p412 = pneg %p312
      %s413 = smul.u32 16, %s28
      %p414 = scmp.lt.s32.totalorder %s27, 1
      %s415 = scalar_select %p414, %s27, 1
      %p416 = scmp.lt.s32.totalorder %s413, 31
      %s417 = scalar_select %p416, %s413, 31
      %s418 = smul.addr %s415, 32
      %s419 = sadd.s32 %s417, %s418
      %s420 = smul.addr %s419, 8
      %s421 = scalar_lea.vmem %s12, %s420
      %p422 = scmp.lt.s32.totalorder %s27, 1
      %s423 = scalar_select %p422, %s27, 1
      %s424 = smul.addr %s423, 32
      %s425 = smul.addr %s424, 8
      %s426 = scalar_lea.vmem %s0, %s425
      %s427 = smul.u32 16, %s28
      %p428 = scmp.lt.s32.totalorder %s27, 1
      %s429 = scalar_select %p428, %s27, 1
      %p430 = scmp.lt.s32.totalorder %s427, 31
      %s431 = scalar_select %p430, %s427, 31
      %s432 = smul.addr %s429, 32
      %s433 = sadd.s32 %s431, %s432
      %s434 = smul.addr %s433, 8
      %s435 = scalar_lea.vmem %s12, %s434
      %s436 = smul.u32 16, %s28
      %p438 = scmp.eq.s32.totalorder %s28, 0
      // Predicated region
      $region69: #{tpu_custom_call.1} parent=67 // pred_check
        %p439 = pneg %p438
      $region70: #{tpu_custom_call.1} parent=67 // pred_check_branch
        %441 = sbr.rel (%p439) target = $region72
      $region71: #{tpu_custom_call.1} parent=67 // pred_region
        %v442 = vld [vmem:[%s426] sm:$0xff]
        %v443 = vld [vmem:[%s426 + $0x8] sm:$0xff]
        %v444 = vld [vmem:[%s426 + $0x10] sm:$0xff]
        %v445 = vld [vmem:[%s426 + $0x18] sm:$0xff]
        %v446 = vld [vmem:[%s426 + $0x20] sm:$0xff]
        %v447 = vld [vmem:[%s426 + $0x28] sm:$0xff]
        %v448 = vld [vmem:[%s426 + $0x30] sm:$0xff]
        %v449 = vld [vmem:[%s426 + $0x38] sm:$0xff]
        %v450 = vld [vmem:[%s426 + $0x40] sm:$0xff]
        %v451 = vld [vmem:[%s426 + $0x48] sm:$0xff]
        %v452 = vld [vmem:[%s426 + $0x50] sm:$0xff]
        %v453 = vld [vmem:[%s426 + $0x58] sm:$0xff]
        %v454 = vld [vmem:[%s426 + $0x60] sm:$0xff]
        %v455 = vld [vmem:[%s426 + $0x68] sm:$0xff]
        %v456 = vld [vmem:[%s426 + $0x70] sm:$0xff]
        %v457 = vld [vmem:[%s426 + $0x78] sm:$0xff]
        %v458 = vld [vmem:[%s426 + $0x80] sm:$0xff]
        %v459 = vld [vmem:[%s426 + $0x88] sm:$0xff]
        %v460 = vld [vmem:[%s426 + $0x90] sm:$0xff]
        %v461 = vld [vmem:[%s426 + $0x98] sm:$0xff]
        %v462 = vld [vmem:[%s426 + $0xa0] sm:$0xff]
        %v463 = vld [vmem:[%s426 + $0xa8] sm:$0xff]
        %v464 = vld [vmem:[%s426 + $0xb0] sm:$0xff]
        %v465 = vld [vmem:[%s426 + $0xb8] sm:$0xff]
        %v466 = vld [vmem:[%s426 + $0xc0] sm:$0xff]
        %v467 = vld [vmem:[%s426 + $0xc8] sm:$0xff]
        %v468 = vld [vmem:[%s426 + $0xd0] sm:$0xff]
        %v469 = vld [vmem:[%s426 + $0xd8] sm:$0xff]
        %v470 = vld [vmem:[%s426 + $0xe0] sm:$0xff]
        %v471 = vld [vmem:[%s426 + $0xe8] sm:$0xff]
        %v472 = vld [vmem:[%s426 + $0xf0] sm:$0xff]
        %v473 = vld [vmem:[%s426 + $0xf8] sm:$0xff]
        %vm474 = vcmask 523264
        %v475 = vsel %vm474, %v442, 0.0
        %v476 = vsel %vm474, %v443, 0.0
        %v477 = vadd.f32 %v475, %v476
        %v478 = vsel %vm474, %v444, 0.0
        %v479 = vadd.f32 %v477, %v478
        %v480 = vsel %vm474, %v445, 0.0
        %v481 = vadd.f32 %v479, %v480
        %v482 = vsel %vm474, %v446, 0.0
        %v483 = vadd.f32 %v481, %v482
        %v484 = vsel %vm474, %v447, 0.0
        %v485 = vadd.f32 %v483, %v484
        %v486 = vsel %vm474, %v448, 0.0
        %v487 = vadd.f32 %v485, %v486
        %v488 = vsel %vm474, %v449, 0.0
        %v489 = vadd.f32 %v487, %v488
        %v490 = vsel %vm474, %v450, 0.0
        %v491 = vadd.f32 %v489, %v490
        %v492 = vsel %vm474, %v451, 0.0
        %v493 = vadd.f32 %v491, %v492
        %v494 = vsel %vm474, %v452, 0.0
        %v495 = vadd.f32 %v493, %v494
        %v496 = vsel %vm474, %v453, 0.0
        %v497 = vadd.f32 %v495, %v496
        %v498 = vsel %vm474, %v454, 0.0
        %v499 = vadd.f32 %v497, %v498
        %v500 = vsel %vm474, %v455, 0.0
        %v501 = vadd.f32 %v499, %v500
        %v502 = vsel %vm474, %v456, 0.0
        %v503 = vadd.f32 %v501, %v502
        %v504 = vsel %vm474, %v457, 0.0
        %v505 = vadd.f32 %v503, %v504
        %v506 = vsel %vm474, %v458, 0.0
        %v507 = vadd.f32 %v505, %v506
        %v508 = vsel %vm474, %v459, 0.0
        %v509 = vadd.f32 %v507, %v508
        %v510 = vsel %vm474, %v460, 0.0
        %v511 = vadd.f32 %v509, %v510
        %v512 = vsel %vm474, %v461, 0.0
        %v513 = vadd.f32 %v511, %v512
        %v514 = vsel %vm474, %v462, 0.0
        %v515 = vadd.f32 %v513, %v514
        %v516 = vsel %vm474, %v463, 0.0
        %v517 = vadd.f32 %v515, %v516
        %v518 = vsel %vm474, %v464, 0.0
        %v519 = vadd.f32 %v517, %v518
        %v520 = vsel %vm474, %v465, 0.0
        %v521 = vadd.f32 %v519, %v520
        %v522 = vsel %vm474, %v466, 0.0
        %v523 = vadd.f32 %v521, %v522
        %v524 = vsel %vm474, %v467, 0.0
        %v525 = vadd.f32 %v523, %v524
        %v526 = vsel %vm474, %v468, 0.0
        %v527 = vadd.f32 %v525, %v526
        %v528 = vsel %vm474, %v469, 0.0
        %v529 = vadd.f32 %v527, %v528
        %v530 = vsel %vm474, %v470, 0.0
        %v531 = vadd.f32 %v529, %v530
        %v532 = vsel %vm474, %v471, 0.0
        %v533 = vadd.f32 %v531, %v532
        %v534 = vsel %vm474, %v472, 0.0
        %v535 = vadd.f32 %v533, %v534
        %v536 = vsel %vm474, %v473, 0.0
        %v537 = vadd.f32 %v535, %v536
        %v538 = vrot.slane %v537, 4
        %v539 = vadd.f32 %v537, %v538
        %v540 = vrot.slane %v539, 2
        %v541 = vadd.f32 %v539, %v540
        %v542 = vrot.slane %v541, 1
        %v543 = vadd.f32 %v541, %v542
        %v544 = vld [vmem:[%s11] sm:$0xff]
        %v545 = vld [vmem:[%s11 + $0x8] sm:$0xff]
        %v546 = vld [vmem:[%s11 + $0x10] sm:$0xff]
        %v547 = vld [vmem:[%s11 + $0x18] sm:$0xff]
        %v548 = vld [vmem:[%s11 + $0x20] sm:$0xff]
        %v549 = vld [vmem:[%s11 + $0x28] sm:$0xff]
        %v550 = vld [vmem:[%s11 + $0x30] sm:$0xff]
        %v551 = vld [vmem:[%s11 + $0x38] sm:$0xff]
        %v553 = vsel %vm474, %v543, 0
        %555 = vmatpush.msra.mxu0 0.0
        %556 = vmatpush.msra.mxu0 0.0
        %557 = vmatpush.msra.mxu0 0.0
        %558 = vmatpush.msra.mxu0 0.0
        %559 = vmatpush.msra.mxu0 0.0
        %560 = vmatpush.msra.mxu0 0.0
        %561 = vmatpush.msra.mxu0 0.0
        %562 = vmatpush.msra.mxu0 0.0
        %563 = vmatpush.msra.mxu0 %v551
        %564 = vmatpush.msra.mxu0 %v550
        %565 = vmatpush.msra.mxu0 %v549
        %566 = vmatpush.msra.mxu0 %v548
        %567 = vmatpush.msra.mxu0 %v547
        %568 = vmatpush.msra.mxu0 %v546
        %569 = vmatpush.msra.mxu0 %v545
        %570 = vmatpush.msra.mxu0 %v544
        %571 = vmatmul.f32.gmra.mxu0 %v553
        %v572 = vpop.f32.mrf.mxu0
        %v573 = vadd.f32 0.0, %v572
        %574 = vdwg.mxu0
        %v575 = vperm.slane %v573, 0
        %v576 = vsub.f32 %v442, %v575
        %v577 = vsub.f32 %v443, %v575
        %v578 = vsub.f32 %v444, %v575
        %v579 = vsub.f32 %v445, %v575
        %v580 = vsub.f32 %v446, %v575
        %v581 = vsub.f32 %v447, %v575
        %v582 = vsub.f32 %v448, %v575
        %v583 = vsub.f32 %v449, %v575
        %v584 = vsub.f32 %v450, %v575
        %v585 = vsub.f32 %v451, %v575
        %v586 = vsub.f32 %v452, %v575
        %v587 = vsub.f32 %v453, %v575
        %v588 = vsub.f32 %v454, %v575
        %v589 = vsub.f32 %v455, %v575
        %v590 = vsub.f32 %v456, %v575
        %v591 = vsub.f32 %v457, %v575
        %v592 = vsub.f32 %v458, %v575
        %v593 = vsub.f32 %v459, %v575
        %v594 = vsub.f32 %v460, %v575
        %v595 = vsub.f32 %v461, %v575
        %v596 = vsub.f32 %v462, %v575
        %v597 = vsub.f32 %v463, %v575
        %v598 = vsub.f32 %v464, %v575
        %v599 = vsub.f32 %v465, %v575
        %v600 = vsub.f32 %v466, %v575
        %v601 = vsub.f32 %v467, %v575
        %v602 = vsub.f32 %v468, %v575
        %v603 = vsub.f32 %v469, %v575
        %v604 = vsub.f32 %v470, %v575
        %v605 = vsub.f32 %v471, %v575
        %v606 = vsub.f32 %v472, %v575
        %v607 = vsub.f32 %v473, %v575
        %v608 = vmul.f32 %v576, %v576
        %v609 = vmul.f32 %v577, %v577
        %v610 = vmul.f32 %v578, %v578
        %v611 = vmul.f32 %v579, %v579
        %v612 = vmul.f32 %v580, %v580
        %v613 = vmul.f32 %v581, %v581
        %v614 = vmul.f32 %v582, %v582
        %v615 = vmul.f32 %v583, %v583
        %v616 = vmul.f32 %v584, %v584
        %v617 = vmul.f32 %v585, %v585
        %v618 = vmul.f32 %v586, %v586
        %v619 = vmul.f32 %v587, %v587
        %v620 = vmul.f32 %v588, %v588
        %v621 = vmul.f32 %v589, %v589
        %v622 = vmul.f32 %v590, %v590
        %v623 = vmul.f32 %v591, %v591
        %v624 = vmul.f32 %v592, %v592
        %v625 = vmul.f32 %v593, %v593
        %v626 = vmul.f32 %v594, %v594
        %v627 = vmul.f32 %v595, %v595
        %v628 = vmul.f32 %v596, %v596
        %v629 = vmul.f32 %v597, %v597
        %v630 = vmul.f32 %v598, %v598
        %v631 = vmul.f32 %v599, %v599
        %v632 = vmul.f32 %v600, %v600
        %v633 = vmul.f32 %v601, %v601
        %v634 = vmul.f32 %v602, %v602
        %v635 = vmul.f32 %v603, %v603
        %v636 = vmul.f32 %v604, %v604
        %v637 = vmul.f32 %v605, %v605
        %v638 = vmul.f32 %v606, %v606
        %v639 = vmul.f32 %v607, %v607
        %v640 = vsel %vm474, %v608, 0.0
        %v641 = vsel %vm474, %v609, 0.0
        %v642 = vadd.f32 %v640, %v641
        %v643 = vsel %vm474, %v610, 0.0
        %v644 = vadd.f32 %v642, %v643
        %v645 = vsel %vm474, %v611, 0.0
        %v646 = vadd.f32 %v644, %v645
        %v647 = vsel %vm474, %v612, 0.0
        %v648 = vadd.f32 %v646, %v647
        %v649 = vsel %vm474, %v613, 0.0
        %v650 = vadd.f32 %v648, %v649
        %v651 = vsel %vm474, %v614, 0.0
        %v652 = vadd.f32 %v650, %v651
        %v653 = vsel %vm474, %v615, 0.0
        %v654 = vadd.f32 %v652, %v653
        %v655 = vsel %vm474, %v616, 0.0
        %v656 = vadd.f32 %v654, %v655
        %v657 = vsel %vm474, %v617, 0.0
        %v658 = vadd.f32 %v656, %v657
        %v659 = vsel %vm474, %v618, 0.0
        %v660 = vadd.f32 %v658, %v659
        %v661 = vsel %vm474, %v619, 0.0
        %v662 = vadd.f32 %v660, %v661
        %v663 = vsel %vm474, %v620, 0.0
        %v664 = vadd.f32 %v662, %v663
        %v665 = vsel %vm474, %v621, 0.0
        %v666 = vadd.f32 %v664, %v665
        %v667 = vsel %vm474, %v622, 0.0
        %v668 = vadd.f32 %v666, %v667
        %v669 = vsel %vm474, %v623, 0.0
        %v670 = vadd.f32 %v668, %v669
        %v671 = vsel %vm474, %v624, 0.0
        %v672 = vadd.f32 %v670, %v671
        %v673 = vsel %vm474, %v625, 0.0
        %v674 = vadd.f32 %v672, %v673
        %v675 = vsel %vm474, %v626, 0.0
        %v676 = vadd.f32 %v674, %v675
        %v677 = vsel %vm474, %v627, 0.0
        %v678 = vadd.f32 %v676, %v677
        %v679 = vsel %vm474, %v628, 0.0
        %v680 = vadd.f32 %v678, %v679
        %v681 = vsel %vm474, %v629, 0.0
        %v682 = vadd.f32 %v680, %v681
        %v683 = vsel %vm474, %v630, 0.0
        %v684 = vadd.f32 %v682, %v683
        %v685 = vsel %vm474, %v631, 0.0
        %v686 = vadd.f32 %v684, %v685
        %v687 = vsel %vm474, %v632, 0.0
        %v688 = vadd.f32 %v686, %v687
        %v689 = vsel %vm474, %v633, 0.0
        %v690 = vadd.f32 %v688, %v689
        %v691 = vsel %vm474, %v634, 0.0
        %v692 = vadd.f32 %v690, %v691
        %v693 = vsel %vm474, %v635, 0.0
        %v694 = vadd.f32 %v692, %v693
        %v695 = vsel %vm474, %v636, 0.0
        %v696 = vadd.f32 %v694, %v695
        %v697 = vsel %vm474, %v637, 0.0
        %v698 = vadd.f32 %v696, %v697
        %v699 = vsel %vm474, %v638, 0.0
        %v700 = vadd.f32 %v698, %v699
        %v701 = vsel %vm474, %v639, 0.0
        %v702 = vadd.f32 %v700, %v701
        %v703 = vrot.slane %v702, 4
        %v704 = vadd.f32 %v702, %v703
        %v705 = vrot.slane %v704, 2
        %v706 = vadd.f32 %v704, %v705
        %v707 = vrot.slane %v706, 1
        %v708 = vadd.f32 %v706, %v707
        %v709 = vld [vmem:[%s1] sm:$0x1]
        %v711 = vsel %vm474, %v708, 0
        %713 = vmatpush.msra.mxu0 0.0
        %714 = vmatpush.msra.mxu0 0.0
        %715 = vmatpush.msra.mxu0 0.0
        %716 = vmatpush.msra.mxu0 0.0
        %717 = vmatpush.msra.mxu0 0.0
        %718 = vmatpush.msra.mxu0 0.0
        %719 = vmatpush.msra.mxu0 0.0
        %720 = vmatpush.msra.mxu0 0.0
        %721 = vmatpush.msra.mxu0 %v551
        %722 = vmatpush.msra.mxu0 %v550
        %723 = vmatpush.msra.mxu0 %v549
        %724 = vmatpush.msra.mxu0 %v548
        %725 = vmatpush.msra.mxu0 %v547
        %726 = vmatpush.msra.mxu0 %v546
        %727 = vmatpush.msra.mxu0 %v545
        %728 = vmatpush.msra.mxu0 %v544
        %729 = vmatmul.f32.gmra.mxu0 %v711
        %v730 = vpop.f32.mrf.mxu0
        %v731 = vadd.f32 1e-06, %v730
        %732 = vdwg.mxu0
        %v733 = vrsqrt.pop %v731
        %v734 = vmul.f32 %v733, %v731
        %v735 = vmul.f32 %v734, %v733
        %v736 = vmul.f32 0.5, %v735
        %v737 = vsub.f32 1.5, %v736
        %v738 = vmul.f32 %v733, %v737
        %vm739 = vweird.f32 %v731
        %vm740 = vweird.f32 %v733
        %vm741 = vmor %vm739, %vm740
        %v742 = vsel %vm741, %v733, %v738
        %v743 = vmul.f32 %v709, %v742
        %v745 = vperm.slane %v743, 0
        %v747 = vmul.f32 %v576, %v745
        %v748 = vmul.f32 %v577, %v745
        %v749 = vmul.f32 %v578, %v745
        %v750 = vmul.f32 %v579, %v745
        %v751 = vmul.f32 %v580, %v745
        %v752 = vmul.f32 %v581, %v745
        %v753 = vmul.f32 %v582, %v745
        %v754 = vmul.f32 %v583, %v745
        %v755 = vmul.f32 %v584, %v745
        %v756 = vmul.f32 %v585, %v745
        %v757 = vmul.f32 %v586, %v745
        %v758 = vmul.f32 %v587, %v745
        %v759 = vmul.f32 %v588, %v745
        %v760 = vmul.f32 %v589, %v745
        %v761 = vmul.f32 %v590, %v745
        %v762 = vmul.f32 %v591, %v745
        %v763 = vmul.f32 %v592, %v745
        %v764 = vmul.f32 %v593, %v745
        %v765 = vmul.f32 %v594, %v745
        %v766 = vmul.f32 %v595, %v745
        %v767 = vmul.f32 %v596, %v745
        %v768 = vmul.f32 %v597, %v745
        %v769 = vmul.f32 %v598, %v745
        %v770 = vmul.f32 %v599, %v745
        %v771 = vmul.f32 %v600, %v745
        %v772 = vmul.f32 %v601, %v745
        %v773 = vmul.f32 %v602, %v745
        %v774 = vmul.f32 %v603, %v745
        %v775 = vmul.f32 %v604, %v745
        %v776 = vmul.f32 %v605, %v745
        %v777 = vmul.f32 %v606, %v745
        %v778 = vmul.f32 %v607, %v745
        %v779 = vld [vmem:[%s2] sm:$0x1]
        %v781 = vperm.slane %v779, 0
        %v783 = vadd.f32 %v747, %v781
        %v784 = vadd.f32 %v748, %v781
        %v785 = vadd.f32 %v749, %v781
        %v786 = vadd.f32 %v750, %v781
        %v787 = vadd.f32 %v751, %v781
        %v788 = vadd.f32 %v752, %v781
        %v789 = vadd.f32 %v753, %v781
        %v790 = vadd.f32 %v754, %v781
        %v791 = vadd.f32 %v755, %v781
        %v792 = vadd.f32 %v756, %v781
        %v793 = vadd.f32 %v757, %v781
        %v794 = vadd.f32 %v758, %v781
        %v795 = vadd.f32 %v759, %v781
        %v796 = vadd.f32 %v760, %v781
        %v797 = vadd.f32 %v761, %v781
        %v798 = vadd.f32 %v762, %v781
        %v799 = vadd.f32 %v763, %v781
        %v800 = vadd.f32 %v764, %v781
        %v801 = vadd.f32 %v765, %v781
        %v802 = vadd.f32 %v766, %v781
        %v803 = vadd.f32 %v767, %v781
        %v804 = vadd.f32 %v768, %v781
        %v805 = vadd.f32 %v769, %v781
        %v806 = vadd.f32 %v770, %v781
        %v807 = vadd.f32 %v771, %v781
        %v808 = vadd.f32 %v772, %v781
        %v809 = vadd.f32 %v773, %v781
        %v810 = vadd.f32 %v774, %v781
        %v811 = vadd.f32 %v775, %v781
        %v812 = vadd.f32 %v776, %v781
        %v813 = vadd.f32 %v777, %v781
        %v814 = vadd.f32 %v778, %v781
        %v815 = vpack.c.bf16 %v784, %v783
        %v816 = vpack.c.bf16 %v786, %v785
        %v817 = vpack.c.bf16 %v788, %v787
        %v818 = vpack.c.bf16 %v790, %v789
        %v819 = vpack.c.bf16 %v792, %v791
        %v820 = vpack.c.bf16 %v794, %v793
        %v821 = vpack.c.bf16 %v796, %v795
        %v822 = vpack.c.bf16 %v798, %v797
        %v823 = vpack.c.bf16 %v800, %v799
        %v824 = vpack.c.bf16 %v802, %v801
        %v825 = vpack.c.bf16 %v804, %v803
        %v826 = vpack.c.bf16 %v806, %v805
        %v827 = vpack.c.bf16 %v808, %v807
        %v828 = vpack.c.bf16 %v810, %v809
        %v829 = vpack.c.bf16 %v812, %v811
        %v830 = vpack.c.bf16 %v814, %v813
        %v831 = vld [vmem:[%s3] sm:$0xf]
        %v832 = vld [vmem:[%s3 + $0x4] sm:$0xf]
        %v833 = vld [vmem:[%s3 + $0x8] sm:$0xf]
        %v834 = vld [vmem:[%s3 + $0xc] sm:$0xf]
        %v835 = vld [vmem:[%s3 + $0x10] sm:$0xf]
        %v836 = vld [vmem:[%s3 + $0x14] sm:$0xf]
        %v837 = vld [vmem:[%s3 + $0x18] sm:$0xf]
        %v838 = vld [vmem:[%s3 + $0x1c] sm:$0xf]
        %v839 = vld [vmem:[%s4] sm:$0x1]
        %v841 = vperm.slane %v839, 0
        %v851 = vunpack.c.l.b16 %v831
        %v852 = vunpack.c.l.b16 %v832
        %v853 = vunpack.c.l.b16 %v833
        %v854 = vunpack.c.l.b16 %v834
        %v855 = vunpack.c.l.b16 %v835
        %v856 = vunpack.c.l.b16 %v836
        %v857 = vunpack.c.l.b16 %v837
        %v858 = vunpack.c.l.b16 %v838
        %v859 = vpack.c.b16 %v852, %v851
        %v860 = vpack.c.b16 %v854, %v853
        %v861 = vpack.c.b16 %v856, %v855
        %v862 = vpack.c.b16 %v858, %v857
        %v868 = vsel %vm474, %v815, 0
        %v871 = vsel %vm474, %v816, 0
        %v874 = vsel %vm474, %v817, 0
        %v877 = vsel %vm474, %v818, 0
        %v880 = vsel %vm474, %v819, 0
        %v883 = vsel %vm474, %v820, 0
        %v886 = vsel %vm474, %v821, 0
        %v889 = vsel %vm474, %v822, 0
        %v892 = vsel %vm474, %v823, 0
        %v895 = vsel %vm474, %v824, 0
        %v898 = vsel %vm474, %v825, 0
        %v901 = vsel %vm474, %v826, 0
        %v904 = vsel %vm474, %v827, 0
        %v907 = vsel %vm474, %v828, 0
        %v910 = vsel %vm474, %v829, 0
        %v913 = vsel %vm474, %v830, 0
        %915 = vmatpush.bf16.msra.mxu0 0
        %916 = vmatpush.bf16.msra.mxu0 0
        %917 = vmatpush.bf16.msra.mxu0 0
        %918 = vmatpush.bf16.msra.mxu0 0
        %919 = vmatpush.bf16.msra.mxu0 %v862
        %920 = vmatpush.bf16.msra.mxu0 %v861
        %921 = vmatpush.bf16.msra.mxu0 %v860
        %922 = vmatpush.bf16.msra.mxu0 %v859
        %923 = vmatmul.bf16.gmra.mxu0 %v868
        %v924 = vpop.f32.mrf.mxu0
        %v925 = vadd.f32 %v841, %v924
        %v926 = vpop.f32.mrf.mxu0
        %v927 = vadd.f32 %v841, %v926
        %928 = vmatmul.bf16.gmra.mxu0 %v871
        %v929 = vpop.f32.mrf.mxu0
        %v930 = vadd.f32 %v841, %v929
        %v931 = vpop.f32.mrf.mxu0
        %v932 = vadd.f32 %v841, %v931
        %933 = vmatmul.bf16.gmra.mxu0 %v874
        %v934 = vpop.f32.mrf.mxu0
        %v935 = vadd.f32 %v841, %v934
        %v936 = vpop.f32.mrf.mxu0
        %v937 = vadd.f32 %v841, %v936
        %938 = vmatmul.bf16.gmra.mxu0 %v877
        %v939 = vpop.f32.mrf.mxu0
        %v940 = vadd.f32 %v841, %v939
        %v941 = vpop.f32.mrf.mxu0
        %v942 = vadd.f32 %v841, %v941
        %943 = vmatmul.bf16.gmra.mxu0 %v880
        %v944 = vpop.f32.mrf.mxu0
        %v945 = vadd.f32 %v841, %v944
        %v946 = vpop.f32.mrf.mxu0
        %v947 = vadd.f32 %v841, %v946
        %948 = vmatmul.bf16.gmra.mxu0 %v883
        %v949 = vpop.f32.mrf.mxu0
        %v950 = vadd.f32 %v841, %v949
        %v951 = vpop.f32.mrf.mxu0
        %v952 = vadd.f32 %v841, %v951
        %953 = vmatmul.bf16.gmra.mxu0 %v886
        %v954 = vpop.f32.mrf.mxu0
        %v955 = vadd.f32 %v841, %v954
        %v956 = vpop.f32.mrf.mxu0
        %v957 = vadd.f32 %v841, %v956
        %958 = vmatmul.bf16.gmra.mxu0 %v889
        %v959 = vpop.f32.mrf.mxu0
        %v960 = vadd.f32 %v841, %v959
        %v961 = vpop.f32.mrf.mxu0
        %v962 = vadd.f32 %v841, %v961
        %963 = vmatmul.bf16.gmra.mxu0 %v892
        %v964 = vpop.f32.mrf.mxu0
        %v965 = vadd.f32 %v841, %v964
        %v966 = vpop.f32.mrf.mxu0
        %v967 = vadd.f32 %v841, %v966
        %968 = vmatmul.bf16.gmra.mxu0 %v895
        %v969 = vpop.f32.mrf.mxu0
        %v970 = vadd.f32 %v841, %v969
        %v971 = vpop.f32.mrf.mxu0
        %v972 = vadd.f32 %v841, %v971
        %973 = vmatmul.bf16.gmra.mxu0 %v898
        %v974 = vpop.f32.mrf.mxu0
        %v975 = vadd.f32 %v841, %v974
        %v976 = vpop.f32.mrf.mxu0
        %v977 = vadd.f32 %v841, %v976
        %978 = vmatmul.bf16.gmra.mxu0 %v901
        %v979 = vpop.f32.mrf.mxu0
        %v980 = vadd.f32 %v841, %v979
        %v981 = vpop.f32.mrf.mxu0
        %v982 = vadd.f32 %v841, %v981
        %983 = vmatmul.bf16.gmra.mxu0 %v904
        %v984 = vpop.f32.mrf.mxu0
        %v985 = vadd.f32 %v841, %v984
        %v986 = vpop.f32.mrf.mxu0
        %v987 = vadd.f32 %v841, %v986
        %988 = vmatmul.bf16.gmra.mxu0 %v907
        %v989 = vpop.f32.mrf.mxu0
        %v990 = vadd.f32 %v841, %v989
        %v991 = vpop.f32.mrf.mxu0
        %v992 = vadd.f32 %v841, %v991
        %993 = vmatmul.bf16.gmra.mxu0 %v910
        %v994 = vpop.f32.mrf.mxu0
        %v995 = vadd.f32 %v841, %v994
        %v996 = vpop.f32.mrf.mxu0
        %v997 = vadd.f32 %v841, %v996
        %998 = vmatmul.bf16.gmra.mxu0 %v913
        %v999 = vpop.f32.mrf.mxu0
        %v1000 = vadd.f32 %v841, %v999
        %v1001 = vpop.f32.mrf.mxu0
        %v1002 = vadd.f32 %v841, %v1001
        %1003 = vdwg.mxu0
        %v1004 = vpack.c.bf16 %v925, %v925
        %v1005 = vpack.c.bf16 %v927, %v927
        %v1006 = vpack.c.bf16 %v930, %v930
        %v1007 = vpack.c.bf16 %v932, %v932
        %v1008 = vpack.c.bf16 %v935, %v935
        %v1009 = vpack.c.bf16 %v937, %v937
        %v1010 = vpack.c.bf16 %v940, %v940
        %v1011 = vpack.c.bf16 %v942, %v942
        %v1012 = vpack.c.bf16 %v945, %v945
        %v1013 = vpack.c.bf16 %v947, %v947
        %v1014 = vpack.c.bf16 %v950, %v950
        %v1015 = vpack.c.bf16 %v952, %v952
        %v1016 = vpack.c.bf16 %v955, %v955
        %v1017 = vpack.c.bf16 %v957, %v957
        %v1018 = vpack.c.bf16 %v960, %v960
        %v1019 = vpack.c.bf16 %v962, %v962
        %v1020 = vpack.c.bf16 %v965, %v965
        %v1021 = vpack.c.bf16 %v967, %v967
        %v1022 = vpack.c.bf16 %v970, %v970
        %v1023 = vpack.c.bf16 %v972, %v972
        %v1024 = vpack.c.bf16 %v975, %v975
        %v1025 = vpack.c.bf16 %v977, %v977
        %v1026 = vpack.c.bf16 %v980, %v980
        %v1027 = vpack.c.bf16 %v982, %v982
        %v1028 = vpack.c.bf16 %v985, %v985
        %v1029 = vpack.c.bf16 %v987, %v987
        %v1030 = vpack.c.bf16 %v990, %v990
        %v1031 = vpack.c.bf16 %v992, %v992
        %v1032 = vpack.c.bf16 %v995, %v995
        %v1033 = vpack.c.bf16 %v997, %v997
        %v1034 = vpack.c.bf16 %v1000, %v1000
        %v1035 = vpack.c.bf16 %v1002, %v1002
        %vm1036 = vcmask 519168
        %1037 = vst.msk [vmem:[#allocation2] sm:$0xf] %vm1036, %v1004
        %1038 = vst.msk [vmem:[#allocation2 + $0x4] sm:$0xf] %vm1036, %v1005
        %1039 = vst.msk [vmem:[#allocation2 + $0x8] sm:$0xf] %vm1036, %v1006
        %1040 = vst.msk [vmem:[#allocation2 + $0xc] sm:$0xf] %vm1036, %v1007
        %1041 = vst.msk [vmem:[#allocation2 + $0x10] sm:$0xf] %vm1036, %v1008
        %1042 = vst.msk [vmem:[#allocation2 + $0x14] sm:$0xf] %vm1036, %v1009
        %1043 = vst.msk [vmem:[#allocation2 + $0x18] sm:$0xf] %vm1036, %v1010
        %1044 = vst.msk [vmem:[#allocation2 + $0x1c] sm:$0xf] %vm1036, %v1011
        %1045 = vst.msk [vmem:[#allocation2 + $0x20] sm:$0xf] %vm1036, %v1012
        %1046 = vst.msk [vmem:[#allocation2 + $0x24] sm:$0xf] %vm1036, %v1013
        %1047 = vst.msk [vmem:[#allocation2 + $0x28] sm:$0xf] %vm1036, %v1014
        %1048 = vst.msk [vmem:[#allocation2 + $0x2c] sm:$0xf] %vm1036, %v1015
        %1049 = vst.msk [vmem:[#allocation2 + $0x30] sm:$0xf] %vm1036, %v1016
        %1050 = vst.msk [vmem:[#allocation2 + $0x34] sm:$0xf] %vm1036, %v1017
        %1051 = vst.msk [vmem:[#allocation2 + $0x38] sm:$0xf] %vm1036, %v1018
        %1052 = vst.msk [vmem:[#allocation2 + $0x3c] sm:$0xf] %vm1036, %v1019
        %1053 = vst.msk [vmem:[#allocation2 + $0x40] sm:$0xf] %vm1036, %v1020
        %1054 = vst.msk [vmem:[#allocation2 + $0x44] sm:$0xf] %vm1036, %v1021
        %1055 = vst.msk [vmem:[#allocation2 + $0x48] sm:$0xf] %vm1036, %v1022
        %1056 = vst.msk [vmem:[#allocation2 + $0x4c] sm:$0xf] %vm1036, %v1023
        %1057 = vst.msk [vmem:[#allocation2 + $0x50] sm:$0xf] %vm1036, %v1024
        %1058 = vst.msk [vmem:[#allocation2 + $0x54] sm:$0xf] %vm1036, %v1025
        %1059 = vst.msk [vmem:[#allocation2 + $0x58] sm:$0xf] %vm1036, %v1026
        %1060 = vst.msk [vmem:[#allocation2 + $0x5c] sm:$0xf] %vm1036, %v1027
        %1061 = vst.msk [vmem:[#allocation2 + $0x60] sm:$0xf] %vm1036, %v1028
        %1062 = vst.msk [vmem:[#allocation2 + $0x64] sm:$0xf] %vm1036, %v1029
        %1063 = vst.msk [vmem:[#allocation2 + $0x68] sm:$0xf] %vm1036, %v1030
        %1064 = vst.msk [vmem:[#allocation2 + $0x6c] sm:$0xf] %vm1036, %v1031
        %1065 = vst.msk [vmem:[#allocation2 + $0x70] sm:$0xf] %vm1036, %v1032
        %1066 = vst.msk [vmem:[#allocation2 + $0x74] sm:$0xf] %vm1036, %v1033
        %1067 = vst.msk [vmem:[#allocation2 + $0x78] sm:$0xf] %vm1036, %v1034
        %1068 = vst.msk [vmem:[#allocation2 + $0x7c] sm:$0xf] %vm1036, %v1035
        %v1069 = vld [vmem:[%s5] sm:$0xf]
        %v1070 = vld [vmem:[%s5 + $0x4] sm:$0xf]
        %v1071 = vld [vmem:[%s5 + $0x8] sm:$0xf]
        %v1072 = vld [vmem:[%s5 + $0xc] sm:$0xf]
        %v1073 = vld [vmem:[%s5 + $0x10] sm:$0xf]
        %v1074 = vld [vmem:[%s5 + $0x14] sm:$0xf]
        %v1075 = vld [vmem:[%s5 + $0x18] sm:$0xf]
        %v1076 = vld [vmem:[%s5 + $0x1c] sm:$0xf]
        %v1077 = vld [vmem:[%s6] sm:$0x1]
        %v1079 = vperm.slane %v1077, 0
        %v1089 = vunpack.c.l.b16 %v1069
        %v1090 = vunpack.c.l.b16 %v1070
        %v1091 = vunpack.c.l.b16 %v1071
        %v1092 = vunpack.c.l.b16 %v1072
        %v1093 = vunpack.c.l.b16 %v1073
        %v1094 = vunpack.c.l.b16 %v1074
        %v1095 = vunpack.c.l.b16 %v1075
        %v1096 = vunpack.c.l.b16 %v1076
        %v1097 = vpack.c.b16 %v1090, %v1089
        %v1098 = vpack.c.b16 %v1092, %v1091
        %v1099 = vpack.c.b16 %v1094, %v1093
        %v1100 = vpack.c.b16 %v1096, %v1095
        %1105 = vmatpush.bf16.msra.mxu0 0
        %1106 = vmatpush.bf16.msra.mxu0 0
        %1107 = vmatpush.bf16.msra.mxu0 0
        %1108 = vmatpush.bf16.msra.mxu0 0
        %1109 = vmatpush.bf16.msra.mxu0 %v1100
        %1110 = vmatpush.bf16.msra.mxu0 %v1099
        %1111 = vmatpush.bf16.msra.mxu0 %v1098
        %1112 = vmatpush.bf16.msra.mxu0 %v1097
        %1113 = vmatmul.bf16.gmra.mxu0 %v868
        %v1114 = vpop.f32.mrf.mxu0
        %v1115 = vadd.f32 %v1079, %v1114
        %v1116 = vpop.f32.mrf.mxu0
        %v1117 = vadd.f32 %v1079, %v1116
        %1118 = vmatmul.bf16.gmra.mxu0 %v871
        %v1119 = vpop.f32.mrf.mxu0
        %v1120 = vadd.f32 %v1079, %v1119
        %v1121 = vpop.f32.mrf.mxu0
        %v1122 = vadd.f32 %v1079, %v1121
        %1123 = vmatmul.bf16.gmra.mxu0 %v874
        %v1124 = vpop.f32.mrf.mxu0
        %v1125 = vadd.f32 %v1079, %v1124
        %v1126 = vpop.f32.mrf.mxu0
        %v1127 = vadd.f32 %v1079, %v1126
        %1128 = vmatmul.bf16.gmra.mxu0 %v877
        %v1129 = vpop.f32.mrf.mxu0
        %v1130 = vadd.f32 %v1079, %v1129
        %v1131 = vpop.f32.mrf.mxu0
        %v1132 = vadd.f32 %v1079, %v1131
        %1133 = vmatmul.bf16.gmra.mxu0 %v880
        %v1134 = vpop.f32.mrf.mxu0
        %v1135 = vadd.f32 %v1079, %v1134
        %v1136 = vpop.f32.mrf.mxu0
        %v1137 = vadd.f32 %v1079, %v1136
        %1138 = vmatmul.bf16.gmra.mxu0 %v883
        %v1139 = vpop.f32.mrf.mxu0
        %v1140 = vadd.f32 %v1079, %v1139
        %v1141 = vpop.f32.mrf.mxu0
        %v1142 = vadd.f32 %v1079, %v1141
        %1143 = vmatmul.bf16.gmra.mxu0 %v886
        %v1144 = vpop.f32.mrf.mxu0
        %v1145 = vadd.f32 %v1079, %v1144
        %v1146 = vpop.f32.mrf.mxu0
        %v1147 = vadd.f32 %v1079, %v1146
        %1148 = vmatmul.bf16.gmra.mxu0 %v889
        %v1149 = vpop.f32.mrf.mxu0
        %v1150 = vadd.f32 %v1079, %v1149
        %v1151 = vpop.f32.mrf.mxu0
        %v1152 = vadd.f32 %v1079, %v1151
        %1153 = vmatmul.bf16.gmra.mxu0 %v892
        %v1154 = vpop.f32.mrf.mxu0
        %v1155 = vadd.f32 %v1079, %v1154
        %v1156 = vpop.f32.mrf.mxu0
        %v1157 = vadd.f32 %v1079, %v1156
        %1158 = vmatmul.bf16.gmra.mxu0 %v895
        %v1159 = vpop.f32.mrf.mxu0
        %v1160 = vadd.f32 %v1079, %v1159
        %v1161 = vpop.f32.mrf.mxu0
        %v1162 = vadd.f32 %v1079, %v1161
        %1163 = vmatmul.bf16.gmra.mxu0 %v898
        %v1164 = vpop.f32.mrf.mxu0
        %v1165 = vadd.f32 %v1079, %v1164
        %v1166 = vpop.f32.mrf.mxu0
        %v1167 = vadd.f32 %v1079, %v1166
        %1168 = vmatmul.bf16.gmra.mxu0 %v901
        %v1169 = vpop.f32.mrf.mxu0
        %v1170 = vadd.f32 %v1079, %v1169
        %v1171 = vpop.f32.mrf.mxu0
        %v1172 = vadd.f32 %v1079, %v1171
        %1173 = vmatmul.bf16.gmra.mxu0 %v904
        %v1174 = vpop.f32.mrf.mxu0
        %v1175 = vadd.f32 %v1079, %v1174
        %v1176 = vpop.f32.mrf.mxu0
        %v1177 = vadd.f32 %v1079, %v1176
        %1178 = vmatmul.bf16.gmra.mxu0 %v907
        %v1179 = vpop.f32.mrf.mxu0
        %v1180 = vadd.f32 %v1079, %v1179
        %v1181 = vpop.f32.mrf.mxu0
        %v1182 = vadd.f32 %v1079, %v1181
        %1183 = vmatmul.bf16.gmra.mxu0 %v910
        %v1184 = vpop.f32.mrf.mxu0
        %v1185 = vadd.f32 %v1079, %v1184
        %v1186 = vpop.f32.mrf.mxu0
        %v1187 = vadd.f32 %v1079, %v1186
        %1188 = vmatmul.bf16.gmra.mxu0 %v913
        %v1189 = vpop.f32.mrf.mxu0
        %v1190 = vadd.f32 %v1079, %v1189
        %v1191 = vpop.f32.mrf.mxu0
        %v1192 = vadd.f32 %v1079, %v1191
        %1193 = vdwg.mxu0
        %v1194 = vpack.c.bf16 %v1115, %v1115
        %v1195 = vpack.c.bf16 %v1117, %v1117
        %v1196 = vpack.c.bf16 %v1120, %v1120
        %v1197 = vpack.c.bf16 %v1122, %v1122
        %v1198 = vpack.c.bf16 %v1125, %v1125
        %v1199 = vpack.c.bf16 %v1127, %v1127
        %v1200 = vpack.c.bf16 %v1130, %v1130
        %v1201 = vpack.c.bf16 %v1132, %v1132
        %v1202 = vpack.c.bf16 %v1135, %v1135
        %v1203 = vpack.c.bf16 %v1137, %v1137
        %v1204 = vpack.c.bf16 %v1140, %v1140
        %v1205 = vpack.c.bf16 %v1142, %v1142
        %v1206 = vpack.c.bf16 %v1145, %v1145
        %v1207 = vpack.c.bf16 %v1147, %v1147
        %v1208 = vpack.c.bf16 %v1150, %v1150
        %v1209 = vpack.c.bf16 %v1152, %v1152
        %v1210 = vpack.c.bf16 %v1155, %v1155
        %v1211 = vpack.c.bf16 %v1157, %v1157
        %v1212 = vpack.c.bf16 %v1160, %v1160
        %v1213 = vpack.c.bf16 %v1162, %v1162
        %v1214 = vpack.c.bf16 %v1165, %v1165
        %v1215 = vpack.c.bf16 %v1167, %v1167
        %v1216 = vpack.c.bf16 %v1170, %v1170
        %v1217 = vpack.c.bf16 %v1172, %v1172
        %v1218 = vpack.c.bf16 %v1175, %v1175
        %v1219 = vpack.c.bf16 %v1177, %v1177
        %v1220 = vpack.c.bf16 %v1180, %v1180
        %v1221 = vpack.c.bf16 %v1182, %v1182
        %v1222 = vpack.c.bf16 %v1185, %v1185
        %v1223 = vpack.c.bf16 %v1187, %v1187
        %v1224 = vpack.c.bf16 %v1190, %v1190
        %v1225 = vpack.c.bf16 %v1192, %v1192
        %1226 = vst.msk [vmem:[#allocation3] sm:$0xf] %vm1036, %v1194
        %1227 = vst.msk [vmem:[#allocation3 + $0x4] sm:$0xf] %vm1036, %v1195
        %1228 = vst.msk [vmem:[#allocation3 + $0x8] sm:$0xf] %vm1036, %v1196
        %1229 = vst.msk [vmem:[#allocation3 + $0xc] sm:$0xf] %vm1036, %v1197
        %1230 = vst.msk [vmem:[#allocation3 + $0x10] sm:$0xf] %vm1036, %v1198
        %1231 = vst.msk [vmem:[#allocation3 + $0x14] sm:$0xf] %vm1036, %v1199
        %1232 = vst.msk [vmem:[#allocation3 + $0x18] sm:$0xf] %vm1036, %v1200
        %1233 = vst.msk [vmem:[#allocation3 + $0x1c] sm:$0xf] %vm1036, %v1201
        %1234 = vst.msk [vmem:[#allocation3 + $0x20] sm:$0xf] %vm1036, %v1202
        %1235 = vst.msk [vmem:[#allocation3 + $0x24] sm:$0xf] %vm1036, %v1203
        %1236 = vst.msk [vmem:[#allocation3 + $0x28] sm:$0xf] %vm1036, %v1204
        %1237 = vst.msk [vmem:[#allocation3 + $0x2c] sm:$0xf] %vm1036, %v1205
        %1238 = vst.msk [vmem:[#allocation3 + $0x30] sm:$0xf] %vm1036, %v1206
        %1239 = vst.msk [vmem:[#allocation3 + $0x34] sm:$0xf] %vm1036, %v1207
        %1240 = vst.msk [vmem:[#allocation3 + $0x38] sm:$0xf] %vm1036, %v1208
        %1241 = vst.msk [vmem:[#allocation3 + $0x3c] sm:$0xf] %vm1036, %v1209
        %1242 = vst.msk [vmem:[#allocation3 + $0x40] sm:$0xf] %vm1036, %v1210
        %1243 = vst.msk [vmem:[#allocation3 + $0x44] sm:$0xf] %vm1036, %v1211
        %1244 = vst.msk [vmem:[#allocation3 + $0x48] sm:$0xf] %vm1036, %v1212
        %1245 = vst.msk [vmem:[#allocation3 + $0x4c] sm:$0xf] %vm1036, %v1213
        %1246 = vst.msk [vmem:[#allocation3 + $0x50] sm:$0xf] %vm1036, %v1214
        %1247 = vst.msk [vmem:[#allocation3 + $0x54] sm:$0xf] %vm1036, %v1215
        %1248 = vst.msk [vmem:[#allocation3 + $0x58] sm:$0xf] %vm1036, %v1216
        %1249 = vst.msk [vmem:[#allocation3 + $0x5c] sm:$0xf] %vm1036, %v1217
        %1250 = vst.msk [vmem:[#allocation3 + $0x60] sm:$0xf] %vm1036, %v1218
        %1251 = vst.msk [vmem:[#allocation3 + $0x64] sm:$0xf] %vm1036, %v1219
        %1252 = vst.msk [vmem:[#allocation3 + $0x68] sm:$0xf] %vm1036, %v1220
        %1253 = vst.msk [vmem:[#allocation3 + $0x6c] sm:$0xf] %vm1036, %v1221
        %1254 = vst.msk [vmem:[#allocation3 + $0x70] sm:$0xf] %vm1036, %v1222
        %1255 = vst.msk [vmem:[#allocation3 + $0x74] sm:$0xf] %vm1036, %v1223
        %1256 = vst.msk [vmem:[#allocation3 + $0x78] sm:$0xf] %vm1036, %v1224
        %1257 = vst.msk [vmem:[#allocation3 + $0x7c] sm:$0xf] %vm1036, %v1225
        %v1258 = vld [vmem:[%s7] sm:$0xf]
        %v1259 = vld [vmem:[%s7 + $0x4] sm:$0xf]
        %v1260 = vld [vmem:[%s7 + $0x8] sm:$0xf]
        %v1261 = vld [vmem:[%s7 + $0xc] sm:$0xf]
        %v1262 = vld [vmem:[%s7 + $0x10] sm:$0xf]
        %v1263 = vld [vmem:[%s7 + $0x14] sm:$0xf]
        %v1264 = vld [vmem:[%s7 + $0x18] sm:$0xf]
        %v1265 = vld [vmem:[%s7 + $0x1c] sm:$0xf]
        %v1266 = vld [vmem:[%s8] sm:$0x1]
        %v1268 = vperm.slane %v1266, 0
        %v1278 = vunpack.c.l.b16 %v1258
        %v1279 = vunpack.c.l.b16 %v1259
        %v1280 = vunpack.c.l.b16 %v1260
        %v1281 = vunpack.c.l.b16 %v1261
        %v1282 = vunpack.c.l.b16 %v1262
        %v1283 = vunpack.c.l.b16 %v1263
        %v1284 = vunpack.c.l.b16 %v1264
        %v1285 = vunpack.c.l.b16 %v1265
        %v1286 = vpack.c.b16 %v1279, %v1278
        %v1287 = vpack.c.b16 %v1281, %v1280
        %v1288 = vpack.c.b16 %v1283, %v1282
        %v1289 = vpack.c.b16 %v1285, %v1284
        %1294 = vmatpush.bf16.msra.mxu0 0
        %1295 = vmatpush.bf16.msra.mxu0 0
        %1296 = vmatpush.bf16.msra.mxu0 0
        %1297 = vmatpush.bf16.msra.mxu0 0
        %1298 = vmatpush.bf16.msra.mxu0 %v1289
        %1299 = vmatpush.bf16.msra.mxu0 %v1288
        %1300 = vmatpush.bf16.msra.mxu0 %v1287
        %1301 = vmatpush.bf16.msra.mxu0 %v1286
        %1302 = vmatmul.bf16.gmra.mxu0 %v868
        %v1303 = vpop.f32.mrf.mxu0
        %v1304 = vadd.f32 %v1268, %v1303
        %v1305 = vpop.f32.mrf.mxu0
        %v1306 = vadd.f32 %v1268, %v1305
        %1307 = vmatmul.bf16.gmra.mxu0 %v871
        %v1308 = vpop.f32.mrf.mxu0
        %v1309 = vadd.f32 %v1268, %v1308
        %v1310 = vpop.f32.mrf.mxu0
        %v1311 = vadd.f32 %v1268, %v1310
        %1312 = vmatmul.bf16.gmra.mxu0 %v874
        %v1313 = vpop.f32.mrf.mxu0
        %v1314 = vadd.f32 %v1268, %v1313
        %v1315 = vpop.f32.mrf.mxu0
        %v1316 = vadd.f32 %v1268, %v1315
        %1317 = vmatmul.bf16.gmra.mxu0 %v877
        %v1318 = vpop.f32.mrf.mxu0
        %v1319 = vadd.f32 %v1268, %v1318
        %v1320 = vpop.f32.mrf.mxu0
        %v1321 = vadd.f32 %v1268, %v1320
        %1322 = vmatmul.bf16.gmra.mxu0 %v880
        %v1323 = vpop.f32.mrf.mxu0
        %v1324 = vadd.f32 %v1268, %v1323
        %v1325 = vpop.f32.mrf.mxu0
        %v1326 = vadd.f32 %v1268, %v1325
        %1327 = vmatmul.bf16.gmra.mxu0 %v883
        %v1328 = vpop.f32.mrf.mxu0
        %v1329 = vadd.f32 %v1268, %v1328
        %v1330 = vpop.f32.mrf.mxu0
        %v1331 = vadd.f32 %v1268, %v1330
        %1332 = vmatmul.bf16.gmra.mxu0 %v886
        %v1333 = vpop.f32.mrf.mxu0
        %v1334 = vadd.f32 %v1268, %v1333
        %v1335 = vpop.f32.mrf.mxu0
        %v1336 = vadd.f32 %v1268, %v1335
        %1337 = vmatmul.bf16.gmra.mxu0 %v889
        %v1338 = vpop.f32.mrf.mxu0
        %v1339 = vadd.f32 %v1268, %v1338
        %v1340 = vpop.f32.mrf.mxu0
        %v1341 = vadd.f32 %v1268, %v1340
        %1342 = vmatmul.bf16.gmra.mxu0 %v892
        %v1343 = vpop.f32.mrf.mxu0
        %v1344 = vadd.f32 %v1268, %v1343
        %v1345 = vpop.f32.mrf.mxu0
        %v1346 = vadd.f32 %v1268, %v1345
        %1347 = vmatmul.bf16.gmra.mxu0 %v895
        %v1348 = vpop.f32.mrf.mxu0
        %v1349 = vadd.f32 %v1268, %v1348
        %v1350 = vpop.f32.mrf.mxu0
        %v1351 = vadd.f32 %v1268, %v1350
        %1352 = vmatmul.bf16.gmra.mxu0 %v898
        %v1353 = vpop.f32.mrf.mxu0
        %v1354 = vadd.f32 %v1268, %v1353
        %v1355 = vpop.f32.mrf.mxu0
        %v1356 = vadd.f32 %v1268, %v1355
        %1357 = vmatmul.bf16.gmra.mxu0 %v901
        %v1358 = vpop.f32.mrf.mxu0
        %v1359 = vadd.f32 %v1268, %v1358
        %v1360 = vpop.f32.mrf.mxu0
        %v1361 = vadd.f32 %v1268, %v1360
        %1362 = vmatmul.bf16.gmra.mxu0 %v904
        %v1363 = vpop.f32.mrf.mxu0
        %v1364 = vadd.f32 %v1268, %v1363
        %v1365 = vpop.f32.mrf.mxu0
        %v1366 = vadd.f32 %v1268, %v1365
        %1367 = vmatmul.bf16.gmra.mxu0 %v907
        %v1368 = vpop.f32.mrf.mxu0
        %v1369 = vadd.f32 %v1268, %v1368
        %v1370 = vpop.f32.mrf.mxu0
        %v1371 = vadd.f32 %v1268, %v1370
        %1372 = vmatmul.bf16.gmra.mxu0 %v910
        %v1373 = vpop.f32.mrf.mxu0
        %v1374 = vadd.f32 %v1268, %v1373
        %v1375 = vpop.f32.mrf.mxu0
        %v1376 = vadd.f32 %v1268, %v1375
        %1377 = vmatmul.bf16.gmra.mxu0 %v913
        %v1378 = vpop.f32.mrf.mxu0
        %v1379 = vadd.f32 %v1268, %v1378
        %v1380 = vpop.f32.mrf.mxu0
        %v1381 = vadd.f32 %v1268, %v1380
        %1382 = vdwg.mxu0
        %v1383 = vpack.c.bf16 %v1304, %v1304
        %v1384 = vpack.c.bf16 %v1306, %v1306
        %v1385 = vpack.c.bf16 %v1309, %v1309
        %v1386 = vpack.c.bf16 %v1311, %v1311
        %v1387 = vpack.c.bf16 %v1314, %v1314
        %v1388 = vpack.c.bf16 %v1316, %v1316
        %v1389 = vpack.c.bf16 %v1319, %v1319
        %v1390 = vpack.c.bf16 %v1321, %v1321
        %v1391 = vpack.c.bf16 %v1324, %v1324
        %v1392 = vpack.c.bf16 %v1326, %v1326
        %v1393 = vpack.c.bf16 %v1329, %v1329
        %v1394 = vpack.c.bf16 %v1331, %v1331
        %v1395 = vpack.c.bf16 %v1334, %v1334
        %v1396 = vpack.c.bf16 %v1336, %v1336
        %v1397 = vpack.c.bf16 %v1339, %v1339
        %v1398 = vpack.c.bf16 %v1341, %v1341
        %v1399 = vpack.c.bf16 %v1344, %v1344
        %v1400 = vpack.c.bf16 %v1346, %v1346
        %v1401 = vpack.c.bf16 %v1349, %v1349
        %v1402 = vpack.c.bf16 %v1351, %v1351
        %v1403 = vpack.c.bf16 %v1354, %v1354
        %v1404 = vpack.c.bf16 %v1356, %v1356
        %v1405 = vpack.c.bf16 %v1359, %v1359
        %v1406 = vpack.c.bf16 %v1361, %v1361
        %v1407 = vpack.c.bf16 %v1364, %v1364
        %v1408 = vpack.c.bf16 %v1366, %v1366
        %v1409 = vpack.c.bf16 %v1369, %v1369
        %v1410 = vpack.c.bf16 %v1371, %v1371
        %v1411 = vpack.c.bf16 %v1374, %v1374
        %v1412 = vpack.c.bf16 %v1376, %v1376
        %v1413 = vpack.c.bf16 %v1379, %v1379
        %v1414 = vpack.c.bf16 %v1381, %v1381
        %1415 = vst.msk [vmem:[#allocation4] sm:$0xf] %vm1036, %v1383
        %1416 = vst.msk [vmem:[#allocation4 + $0x4] sm:$0xf] %vm1036, %v1384
        %1417 = vst.msk [vmem:[#allocation4 + $0x8] sm:$0xf] %vm1036, %v1385
        %1418 = vst.msk [vmem:[#allocation4 + $0xc] sm:$0xf] %vm1036, %v1386
        %1419 = vst.msk [vmem:[#allocation4 + $0x10] sm:$0xf] %vm1036, %v1387
        %1420 = vst.msk [vmem:[#allocation4 + $0x14] sm:$0xf] %vm1036, %v1388
        %1421 = vst.msk [vmem:[#allocation4 + $0x18] sm:$0xf] %vm1036, %v1389
        %1422 = vst.msk [vmem:[#allocation4 + $0x1c] sm:$0xf] %vm1036, %v1390
        %1423 = vst.msk [vmem:[#allocation4 + $0x20] sm:$0xf] %vm1036, %v1391
        %1424 = vst.msk [vmem:[#allocation4 + $0x24] sm:$0xf] %vm1036, %v1392
        %1425 = vst.msk [vmem:[#allocation4 + $0x28] sm:$0xf] %vm1036, %v1393
        %1426 = vst.msk [vmem:[#allocation4 + $0x2c] sm:$0xf] %vm1036, %v1394
        %1427 = vst.msk [vmem:[#allocation4 + $0x30] sm:$0xf] %vm1036, %v1395
        %1428 = vst.msk [vmem:[#allocation4 + $0x34] sm:$0xf] %vm1036, %v1396
        %1429 = vst.msk [vmem:[#allocation4 + $0x38] sm:$0xf] %vm1036, %v1397
        %1430 = vst.msk [vmem:[#allocation4 + $0x3c] sm:$0xf] %vm1036, %v1398
        %1431 = vst.msk [vmem:[#allocation4 + $0x40] sm:$0xf] %vm1036, %v1399
        %1432 = vst.msk [vmem:[#allocation4 + $0x44] sm:$0xf] %vm1036, %v1400
        %1433 = vst.msk [vmem:[#allocation4 + $0x48] sm:$0xf] %vm1036, %v1401
        %1434 = vst.msk [vmem:[#allocation4 + $0x4c] sm:$0xf] %vm1036, %v1402
        %1435 = vst.msk [vmem:[#allocation4 + $0x50] sm:$0xf] %vm1036, %v1403
        %1436 = vst.msk [vmem:[#allocation4 + $0x54] sm:$0xf] %vm1036, %v1404
        %1437 = vst.msk [vmem:[#allocation4 + $0x58] sm:$0xf] %vm1036, %v1405
        %1438 = vst.msk [vmem:[#allocation4 + $0x5c] sm:$0xf] %vm1036, %v1406
        %1439 = vst.msk [vmem:[#allocation4 + $0x60] sm:$0xf] %vm1036, %v1407
        %1440 = vst.msk [vmem:[#allocation4 + $0x64] sm:$0xf] %vm1036, %v1408
        %1441 = vst.msk [vmem:[#allocation4 + $0x68] sm:$0xf] %vm1036, %v1409
        %1442 = vst.msk [vmem:[#allocation4 + $0x6c] sm:$0xf] %vm1036, %v1410
        %1443 = vst.msk [vmem:[#allocation4 + $0x70] sm:$0xf] %vm1036, %v1411
        %1444 = vst.msk [vmem:[#allocation4 + $0x74] sm:$0xf] %vm1036, %v1412
        %1445 = vst.msk [vmem:[#allocation4 + $0x78] sm:$0xf] %vm1036, %v1413
        %1446 = vst.msk [vmem:[#allocation4 + $0x7c] sm:$0xf] %vm1036, %v1414
      $region72: #{tpu_custom_call.1} parent=67 // pred_fallthru
        _
      %s1447 = smul.u32 %s28, 128
      %s1448 = sshra.s32 %s1447, 3
      %s1449 = sand.u32 %s1447, 7
      %s1450 = smul.addr %s1448, 4
      %s1451 = scalar_lea.vmem [#allocation2], %s1450
      %v1452 = vld [vmem:[%s1451] sm:$0xf]
      %v1453 = vld [vmem:[%s1451 + $0x4] sm:$0xf]
      %v1454 = vld [vmem:[%s1451 + $0x8] sm:$0xf]
      %v1455 = vld [vmem:[%s1451 + $0xc] sm:$0xf]
      %v1456 = vld [vmem:[%s1451 + $0x10] sm:$0xf]
      %v1457 = vld [vmem:[%s1451 + $0x14] sm:$0xf]
      %v1458 = vld [vmem:[%s1451 + $0x18] sm:$0xf]
      %v1459 = vld [vmem:[%s1451 + $0x1c] sm:$0xf]
      %v1460 = vld [vmem:[%s1451 + $0x20] sm:$0xf]
      %v1461 = vld [vmem:[%s1451 + $0x24] sm:$0xf]
      %v1462 = vld [vmem:[%s1451 + $0x28] sm:$0xf]
      %v1463 = vld [vmem:[%s1451 + $0x2c] sm:$0xf]
      %v1464 = vld [vmem:[%s1451 + $0x30] sm:$0xf]
      %v1465 = vld [vmem:[%s1451 + $0x34] sm:$0xf]
      %v1466 = vld [vmem:[%s1451 + $0x38] sm:$0xf]
      %v1467 = vld [vmem:[%s1451 + $0x3c] sm:$0xf]
      %v1468 = vld [vmem:[#allocation3] sm:$0xf]
      %v1469 = vld [vmem:[#allocation3 + $0x4] sm:$0xf]
      %v1470 = vld [vmem:[#allocation3 + $0x8] sm:$0xf]
      %v1471 = vld [vmem:[#allocation3 + $0xc] sm:$0xf]
      %v1472 = vld [vmem:[#allocation3 + $0x10] sm:$0xf]
      %v1473 = vld [vmem:[#allocation3 + $0x14] sm:$0xf]
      %v1474 = vld [vmem:[#allocation3 + $0x18] sm:$0xf]
      %v1475 = vld [vmem:[#allocation3 + $0x1c] sm:$0xf]
      %v1476 = vld [vmem:[#allocation3 + $0x20] sm:$0xf]
      %v1477 = vld [vmem:[#allocation3 + $0x24] sm:$0xf]
      %v1478 = vld [vmem:[#allocation3 + $0x28] sm:$0xf]
      %v1479 = vld [vmem:[#allocation3 + $0x2c] sm:$0xf]
      %v1480 = vld [vmem:[#allocation3 + $0x30] sm:$0xf]
      %v1481 = vld [vmem:[#allocation3 + $0x34] sm:$0xf]
      %v1482 = vld [vmem:[#allocation3 + $0x38] sm:$0xf]
      %v1483 = vld [vmem:[#allocation3 + $0x3c] sm:$0xf]
      %v1484 = vld [vmem:[#allocation3 + $0x40] sm:$0xf]
      %v1485 = vld [vmem:[#allocation3 + $0x44] sm:$0xf]
      %v1486 = vld [vmem:[#allocation3 + $0x48] sm:$0xf]
      %v1487 = vld [vmem:[#allocation3 + $0x4c] sm:$0xf]
      %v1488 = vld [vmem:[#allocation3 + $0x50] sm:$0xf]
      %v1489 = vld [vmem:[#allocation3 + $0x54] sm:$0xf]
      %v1490 = vld [vmem:[#allocation3 + $0x58] sm:$0xf]
      %v1491 = vld [vmem:[#allocation3 + $0x5c] sm:$0xf]
      %v1492 = vld [vmem:[#allocation3 + $0x60] sm:$0xf]
      %v1493 = vld [vmem:[#allocation3 + $0x64] sm:$0xf]
      %v1494 = vld [vmem:[#allocation3 + $0x68] sm:$0xf]
      %v1495 = vld [vmem:[#allocation3 + $0x6c] sm:$0xf]
      %v1496 = vld [vmem:[#allocation3 + $0x70] sm:$0xf]
      %v1497 = vld [vmem:[#allocation3 + $0x74] sm:$0xf]
      %v1498 = vld [vmem:[#allocation3 + $0x78] sm:$0xf]
      %v1499 = vld [vmem:[#allocation3 + $0x7c] sm:$0xf]
      %v1516 = vunpack.c.l.b16 %v1452
      %v1517 = vunpack.c.l.b16 %v1453
      %v1518 = vunpack.c.l.b16 %v1454
      %v1519 = vunpack.c.l.b16 %v1455
      %v1520 = vunpack.c.l.b16 %v1456
      %v1521 = vunpack.c.l.b16 %v1457
      %v1522 = vunpack.c.l.b16 %v1458
      %v1523 = vunpack.c.l.b16 %v1459
      %v1524 = vunpack.c.l.b16 %v1460
      %v1525 = vunpack.c.l.b16 %v1461
      %v1526 = vunpack.c.l.b16 %v1462
      %v1527 = vunpack.c.l.b16 %v1463
      %v1528 = vunpack.c.l.b16 %v1464
      %v1529 = vunpack.c.l.b16 %v1465
      %v1530 = vunpack.c.l.b16 %v1466
      %v1531 = vunpack.c.l.b16 %v1467
      %v1532 = vpack.c.b16 %v1517, %v1516
      %v1533 = vpack.c.b16 %v1519, %v1518
      %v1534 = vpack.c.b16 %v1521, %v1520
      %v1535 = vpack.c.b16 %v1523, %v1522
      %v1536 = vpack.c.b16 %v1525, %v1524
      %v1537 = vpack.c.b16 %v1527, %v1526
      %v1538 = vpack.c.b16 %v1529, %v1528
      %v1539 = vpack.c.b16 %v1531, %v1530
      %v1572 = vunpack.c.l.b16 %v1468
      %v1573 = vunpack.c.l.b16 %v1469
      %v1574 = vunpack.c.l.b16 %v1470
      %v1575 = vunpack.c.l.b16 %v1471
      %v1576 = vunpack.c.l.b16 %v1472
      %v1577 = vunpack.c.l.b16 %v1473
      %v1578 = vunpack.c.l.b16 %v1474
      %v1579 = vunpack.c.l.b16 %v1475
      %v1580 = vunpack.c.l.b16 %v1476
      %v1581 = vunpack.c.l.b16 %v1477
      %v1582 = vunpack.c.l.b16 %v1478
      %v1583 = vunpack.c.l.b16 %v1479
      %v1584 = vunpack.c.l.b16 %v1480
      %v1585 = vunpack.c.l.b16 %v1481
      %v1586 = vunpack.c.l.b16 %v1482
      %v1587 = vunpack.c.l.b16 %v1483
      %v1588 = vunpack.c.l.b16 %v1484
      %v1589 = vunpack.c.l.b16 %v1485
      %v1590 = vunpack.c.l.b16 %v1486
      %v1591 = vunpack.c.l.b16 %v1487
      %v1592 = vunpack.c.l.b16 %v1488
      %v1593 = vunpack.c.l.b16 %v1489
      %v1594 = vunpack.c.l.b16 %v1490
      %v1595 = vunpack.c.l.b16 %v1491
      %v1596 = vunpack.c.l.b16 %v1492
      %v1597 = vunpack.c.l.b16 %v1493
      %v1598 = vunpack.c.l.b16 %v1494
      %v1599 = vunpack.c.l.b16 %v1495
      %v1600 = vunpack.c.l.b16 %v1496
      %v1601 = vunpack.c.l.b16 %v1497
      %v1602 = vunpack.c.l.b16 %v1498
      %v1603 = vunpack.c.l.b16 %v1499
      %v1604 = vpack.c.b16 %v1573, %v1572
      %v1605 = vpack.c.b16 %v1575, %v1574
      %v1606 = vpack.c.b16 %v1577, %v1576
      %v1607 = vpack.c.b16 %v1579, %v1578
      %v1608 = vpack.c.b16 %v1581, %v1580
      %v1609 = vpack.c.b16 %v1583, %v1582
      %v1610 = vpack.c.b16 %v1585, %v1584
      %v1611 = vpack.c.b16 %v1587, %v1586
      %v1612 = vpack.c.b16 %v1589, %v1588
      %v1613 = vpack.c.b16 %v1591, %v1590
      %v1614 = vpack.c.b16 %v1593, %v1592
      %v1615 = vpack.c.b16 %v1595, %v1594
      %v1616 = vpack.c.b16 %v1597, %v1596
      %v1617 = vpack.c.b16 %v1599, %v1598
      %v1618 = vpack.c.b16 %v1601, %v1600
      %v1619 = vpack.c.b16 %v1603, %v1602
      %vm1620 = vcmask 523264
      %v1622 = vsel %vm1620, %v1532, 0
      %v1625 = vsel %vm1620, %v1533, 0
      %v1628 = vsel %vm1620, %v1534, 0
      %v1631 = vsel %vm1620, %v1535, 0
      %v1634 = vsel %vm1620, %v1536, 0
      %v1637 = vsel %vm1620, %v1537, 0
      %v1640 = vsel %vm1620, %v1538, 0
      %v1643 = vsel %vm1620, %v1539, 0
      %v1646 = vsel %vm1620, %v1604, 0
      %v1649 = vsel %vm1620, %v1605, 0
      %v1652 = vsel %vm1620, %v1606, 0
      %v1655 = vsel %vm1620, %v1607, 0
      %v1658 = vsel %vm1620, %v1608, 0
      %v1661 = vsel %vm1620, %v1609, 0
      %v1664 = vsel %vm1620, %v1610, 0
      %v1667 = vsel %vm1620, %v1611, 0
      %v1670 = vsel %vm1620, %v1612, 0
      %v1673 = vsel %vm1620, %v1613, 0
      %v1676 = vsel %vm1620, %v1614, 0
      %v1679 = vsel %vm1620, %v1615, 0
      %v1682 = vsel %vm1620, %v1616, 0
      %v1685 = vsel %vm1620, %v1617, 0
      %v1688 = vsel %vm1620, %v1618, 0
      %v1691 = vsel %vm1620, %v1619, 0
      %1693 = vmatpush.bf16.xpose.msra.mxu0 %v1667
      %1694 = vmatpush.bf16.xpose.msra.mxu0 %v1664
      %1695 = vmatpush.bf16.xpose.msra.mxu0 %v1661
      %1696 = vmatpush.bf16.xpose.msra.mxu0 %v1658
      %1697 = vmatpush.bf16.xpose.msra.mxu0 %v1655
      %1698 = vmatpush.bf16.xpose.msra.mxu0 %v1652
      %1699 = vmatpush.bf16.xpose.msra.mxu0 %v1649
      %1700 = vmatpush.bf16.xpose.msra.mxu0 %v1646
      %1701 = vmatmul.bf16.gmra.mxu0 %v1622
      %v1702 = vpop.f32.mrf.mxu0
      %v1703 = vadd.f32 0.0, %v1702
      %v1704 = vpop.f32.mrf.mxu0
      %v1705 = vadd.f32 0.0, %v1704
      %1706 = vmatmul.bf16.gmra.mxu0 %v1625
      %v1707 = vpop.f32.mrf.mxu0
      %v1708 = vadd.f32 0.0, %v1707
      %v1709 = vpop.f32.mrf.mxu0
      %v1710 = vadd.f32 0.0, %v1709
      %1711 = vmatmul.bf16.gmra.mxu0 %v1628
      %v1712 = vpop.f32.mrf.mxu0
      %v1713 = vadd.f32 0.0, %v1712
      %v1714 = vpop.f32.mrf.mxu0
      %v1715 = vadd.f32 0.0, %v1714
      %1716 = vmatmul.bf16.gmra.mxu0 %v1631
      %v1717 = vpop.f32.mrf.mxu0
      %v1718 = vadd.f32 0.0, %v1717
      %v1719 = vpop.f32.mrf.mxu0
      %v1720 = vadd.f32 0.0, %v1719
      %1721 = vmatmul.bf16.gmra.mxu0 %v1634
      %v1722 = vpop.f32.mrf.mxu0
      %v1723 = vadd.f32 0.0, %v1722
      %v1724 = vpop.f32.mrf.mxu0
      %v1725 = vadd.f32 0.0, %v1724
      %1726 = vmatmul.bf16.gmra.mxu0 %v1637
      %v1727 = vpop.f32.mrf.mxu0
      %v1728 = vadd.f32 0.0, %v1727
      %v1729 = vpop.f32.mrf.mxu0
      %v1730 = vadd.f32 0.0, %v1729
      %1731 = vmatmul.bf16.gmra.mxu0 %v1640
      %v1732 = vpop.f32.mrf.mxu0
      %v1733 = vadd.f32 0.0, %v1732
      %v1734 = vpop.f32.mrf.mxu0
      %v1735 = vadd.f32 0.0, %v1734
      %1736 = vmatmul.bf16.gmra.mxu0 %v1643
      %v1737 = vpop.f32.mrf.mxu0
      %v1738 = vadd.f32 0.0, %v1737
      %v1739 = vpop.f32.mrf.mxu0
      %v1740 = vadd.f32 0.0, %v1739
      %1741 = vdwg.mxu0
      %1742 = vmatpush.bf16.xpose.msra.mxu0 %v1691
      %1743 = vmatpush.bf16.xpose.msra.mxu0 %v1688
      %1744 = vmatpush.bf16.xpose.msra.mxu0 %v1685
      %1745 = vmatpush.bf16.xpose.msra.mxu0 %v1682
      %1746 = vmatpush.bf16.xpose.msra.mxu0 %v1679
      %1747 = vmatpush.bf16.xpose.msra.mxu0 %v1676
      %1748 = vmatpush.bf16.xpose.msra.mxu0 %v1673
      %1749 = vmatpush.bf16.xpose.msra.mxu0 %v1670
      %1750 = vmatmul.bf16.gmra.mxu0 %v1622
      %v1751 = vpop.f32.mrf.mxu0
      %v1752 = vadd.f32 0.0, %v1751
      %v1753 = vpop.f32.mrf.mxu0
      %v1754 = vadd.f32 0.0, %v1753
      %1755 = vmatmul.bf16.gmra.mxu0 %v1625
      %v1756 = vpop.f32.mrf.mxu0
      %v1757 = vadd.f32 0.0, %v1756
      %v1758 = vpop.f32.mrf.mxu0
      %v1759 = vadd.f32 0.0, %v1758
      %1760 = vmatmul.bf16.gmra.mxu0 %v1628
      %v1761 = vpop.f32.mrf.mxu0
      %v1762 = vadd.f32 0.0, %v1761
      %v1763 = vpop.f32.mrf.mxu0
      %v1764 = vadd.f32 0.0, %v1763
      %1765 = vmatmul.bf16.gmra.mxu0 %v1631
      %v1766 = vpop.f32.mrf.mxu0
      %v1767 = vadd.f32 0.0, %v1766
      %v1768 = vpop.f32.mrf.mxu0
      %v1769 = vadd.f32 0.0, %v1768
      %1770 = vmatmul.bf16.gmra.mxu0 %v1634
      %v1771 = vpop.f32.mrf.mxu0
      %v1772 = vadd.f32 0.0, %v1771
      %v1773 = vpop.f32.mrf.mxu0
      %v1774 = vadd.f32 0.0, %v1773
      %1775 = vmatmul.bf16.gmra.mxu0 %v1637
      %v1776 = vpop.f32.mrf.mxu0
      %v1777 = vadd.f32 0.0, %v1776
      %v1778 = vpop.f32.mrf.mxu0
      %v1779 = vadd.f32 0.0, %v1778
      %1780 = vmatmul.bf16.gmra.mxu0 %v1640
      %v1781 = vpop.f32.mrf.mxu0
      %v1782 = vadd.f32 0.0, %v1781
      %v1783 = vpop.f32.mrf.mxu0
      %v1784 = vadd.f32 0.0, %v1783
      %1785 = vmatmul.bf16.gmra.mxu0 %v1643
      %v1786 = vpop.f32.mrf.mxu0
      %v1787 = vadd.f32 0.0, %v1786
      %v1788 = vpop.f32.mrf.mxu0
      %v1789 = vadd.f32 0.0, %v1788
      %1790 = vdwg.mxu0
      %v1791 = vmax.f32 %v1703, %v1752
      %1792 = vmax.xlane.f32.xlu0 %v1791
      %v1793 = vpop.xlane.xlu0 %1792
      %v1794 = vmax.f32 %v1705, %v1754
      %1795 = vmax.xlane.f32.xlu0 %v1794
      %v1796 = vpop.xlane.xlu0 %1795
      %v1797 = vmax.f32 %v1708, %v1757
      %1798 = vmax.xlane.f32.xlu0 %v1797
      %v1799 = vpop.xlane.xlu0 %1798
      %v1800 = vmax.f32 %v1710, %v1759
      %1801 = vmax.xlane.f32.xlu0 %v1800
      %v1802 = vpop.xlane.xlu0 %1801
      %v1803 = vmax.f32 %v1713, %v1762
      %1804 = vmax.xlane.f32.xlu0 %v1803
      %v1805 = vpop.xlane.xlu0 %1804
      %v1806 = vmax.f32 %v1715, %v1764
      %1807 = vmax.xlane.f32.xlu0 %v1806
      %v1808 = vpop.xlane.xlu0 %1807
      %v1809 = vmax.f32 %v1718, %v1767
      %1810 = vmax.xlane.f32.xlu0 %v1809
      %v1811 = vpop.xlane.xlu0 %1810
      %v1812 = vmax.f32 %v1720, %v1769
      %1813 = vmax.xlane.f32.xlu0 %v1812
      %v1814 = vpop.xlane.xlu0 %1813
      %v1815 = vmax.f32 %v1723, %v1772
      %1816 = vmax.xlane.f32.xlu0 %v1815
      %v1817 = vpop.xlane.xlu0 %1816
      %v1818 = vmax.f32 %v1725, %v1774
      %1819 = vmax.xlane.f32.xlu0 %v1818
      %v1820 = vpop.xlane.xlu0 %1819
      %v1821 = vmax.f32 %v1728, %v1777
      %1822 = vmax.xlane.f32.xlu0 %v1821
      %v1823 = vpop.xlane.xlu0 %1822
      %v1824 = vmax.f32 %v1730, %v1779
      %1825 = vmax.xlane.f32.xlu0 %v1824
      %v1826 = vpop.xlane.xlu0 %1825
      %v1827 = vmax.f32 %v1733, %v1782
      %1828 = vmax.xlane.f32.xlu0 %v1827
      %v1829 = vpop.xlane.xlu0 %1828
      %v1830 = vmax.f32 %v1735, %v1784
      %1831 = vmax.xlane.f32.xlu0 %v1830
      %v1832 = vpop.xlane.xlu0 %1831
      %v1833 = vmax.f32 %v1738, %v1787
      %1834 = vmax.xlane.f32.xlu0 %v1833
      %v1835 = vpop.xlane.xlu0 %1834
      %v1836 = vmax.f32 %v1740, %v1789
      %1837 = vmax.xlane.f32.xlu0 %v1836
      %v1838 = vpop.xlane.xlu0 %1837
      %v1839 = vsub.f32 %v1703, %v1793
      %v1840 = vsub.f32 %v1752, %v1793
      %v1841 = vsub.f32 %v1705, %v1796
      %v1842 = vsub.f32 %v1754, %v1796
      %v1843 = vsub.f32 %v1708, %v1799
      %v1844 = vsub.f32 %v1757, %v1799
      %v1845 = vsub.f32 %v1710, %v1802
      %v1846 = vsub.f32 %v1759, %v1802
      %v1847 = vsub.f32 %v1713, %v1805
      %v1848 = vsub.f32 %v1762, %v1805
      %v1849 = vsub.f32 %v1715, %v1808
      %v1850 = vsub.f32 %v1764, %v1808
      %v1851 = vsub.f32 %v1718, %v1811
      %v1852 = vsub.f32 %v1767, %v1811
      %v1853 = vsub.f32 %v1720, %v1814
      %v1854 = vsub.f32 %v1769, %v1814
      %v1855 = vsub.f32 %v1723, %v1817
      %v1856 = vsub.f32 %v1772, %v1817
      %v1857 = vsub.f32 %v1725, %v1820
      %v1858 = vsub.f32 %v1774, %v1820
      %v1859 = vsub.f32 %v1728, %v1823
      %v1860 = vsub.f32 %v1777, %v1823
      %v1861 = vsub.f32 %v1730, %v1826
      %v1862 = vsub.f32 %v1779, %v1826
      %v1863 = vsub.f32 %v1733, %v1829
      %v1864 = vsub.f32 %v1782, %v1829
      %v1865 = vsub.f32 %v1735, %v1832
      %v1866 = vsub.f32 %v1784, %v1832
      %v1867 = vsub.f32 %v1738, %v1835
      %v1868 = vsub.f32 %v1787, %v1835
      %v1869 = vsub.f32 %v1740, %v1838
      %v1870 = vsub.f32 %v1789, %v1838
      %v1871 = vmul.f32 %v1839, 1.442695
      %v1872 = vpow.pop %v1871
      %v1873 = vmul.f32 %v1840, 1.442695
      %v1874 = vpow.pop %v1873
      %v1875 = vmul.f32 %v1841, 1.442695
      %v1876 = vpow.pop %v1875
      %v1877 = vmul.f32 %v1842, 1.442695
      %v1878 = vpow.pop %v1877
      %v1879 = vmul.f32 %v1843, 1.442695
      %v1880 = vpow.pop %v1879
      %v1881 = vmul.f32 %v1844, 1.442695
      %v1882 = vpow.pop %v1881
      %v1883 = vmul.f32 %v1845, 1.442695
      %v1884 = vpow.pop %v1883
      %v1885 = vmul.f32 %v1846, 1.442695
      %v1886 = vpow.pop %v1885
      %v1887 = vmul.f32 %v1847, 1.442695
      %v1888 = vpow.pop %v1887
      %v1889 = vmul.f32 %v1848, 1.442695
      %v1890 = vpow.pop %v1889
      %v1891 = vmul.f32 %v1849, 1.442695
      %v1892 = vpow.pop %v1891
      %v1893 = vmul.f32 %v1850, 1.442695
      %v1894 = vpow.pop %v1893
      %v1895 = vmul.f32 %v1851, 1.442695
      %v1896 = vpow.pop %v1895
      %v1897 = vmul.f32 %v1852, 1.442695
      %v1898 = vpow.pop %v1897
      %v1899 = vmul.f32 %v1853, 1.442695
      %v1900 = vpow.pop %v1899
      %v1901 = vmul.f32 %v1854, 1.442695
      %v1902 = vpow.pop %v1901
      %v1903 = vmul.f32 %v1855, 1.442695
      %v1904 = vpow.pop %v1903
      %v1905 = vmul.f32 %v1856, 1.442695
      %v1906 = vpow.pop %v1905
      %v1907 = vmul.f32 %v1857, 1.442695
      %v1908 = vpow.pop %v1907
      %v1909 = vmul.f32 %v1858, 1.442695
      %v1910 = vpow.pop %v1909
      %v1911 = vmul.f32 %v1859, 1.442695
      %v1912 = vpow.pop %v1911
      %v1913 = vmul.f32 %v1860, 1.442695
      %v1914 = vpow.pop %v1913
      %v1915 = vmul.f32 %v1861, 1.442695
      %v1916 = vpow.pop %v1915
      %v1917 = vmul.f32 %v1862, 1.442695
      %v1918 = vpow.pop %v1917
      %v1919 = vmul.f32 %v1863, 1.442695
      %v1920 = vpow.pop %v1919
      %v1921 = vmul.f32 %v1864, 1.442695
      %v1922 = vpow.pop %v1921
      %v1923 = vmul.f32 %v1865, 1.442695
      %v1924 = vpow.pop %v1923
      %v1925 = vmul.f32 %v1866, 1.442695
      %v1926 = vpow.pop %v1925
      %v1927 = vmul.f32 %v1867, 1.442695
      %v1928 = vpow.pop %v1927
      %v1929 = vmul.f32 %v1868, 1.442695
      %v1930 = vpow.pop %v1929
      %v1931 = vmul.f32 %v1869, 1.442695
      %v1932 = vpow.pop %v1931
      %v1933 = vmul.f32 %v1870, 1.442695
      %v1934 = vpow.pop %v1933
      %v1935 = vadd.f32 %v1872, %v1874
      %1936 = vadd.xlane.f32.xlu0 %v1935
      %v1937 = vpop.xlane.xlu0 %1936
      %v1938 = vadd.f32 %v1876, %v1878
      %1939 = vadd.xlane.f32.xlu0 %v1938
      %v1940 = vpop.xlane.xlu0 %1939
      %v1941 = vadd.f32 %v1880, %v1882
      %1942 = vadd.xlane.f32.xlu0 %v1941
      %v1943 = vpop.xlane.xlu0 %1942
      %v1944 = vadd.f32 %v1884, %v1886
      %1945 = vadd.xlane.f32.xlu0 %v1944
      %v1946 = vpop.xlane.xlu0 %1945
      %v1947 = vadd.f32 %v1888, %v1890
      %1948 = vadd.xlane.f32.xlu0 %v1947
      %v1949 = vpop.xlane.xlu0 %1948
      %v1950 = vadd.f32 %v1892, %v1894
      %1951 = vadd.xlane.f32.xlu0 %v1950
      %v1952 = vpop.xlane.xlu0 %1951
      %v1953 = vadd.f32 %v1896, %v1898
      %1954 = vadd.xlane.f32.xlu0 %v1953
      %v1955 = vpop.xlane.xlu0 %1954
      %v1956 = vadd.f32 %v1900, %v1902
      %1957 = vadd.xlane.f32.xlu0 %v1956
      %v1958 = vpop.xlane.xlu0 %1957
      %v1959 = vadd.f32 %v1904, %v1906
      %1960 = vadd.xlane.f32.xlu0 %v1959
      %v1961 = vpop.xlane.xlu0 %1960
      %v1962 = vadd.f32 %v1908, %v1910
      %1963 = vadd.xlane.f32.xlu0 %v1962
      %v1964 = vpop.xlane.xlu0 %1963
      %v1965 = vadd.f32 %v1912, %v1914
      %1966 = vadd.xlane.f32.xlu0 %v1965
      %v1967 = vpop.xlane.xlu0 %1966
      %v1968 = vadd.f32 %v1916, %v1918
      %1969 = vadd.xlane.f32.xlu0 %v1968
      %v1970 = vpop.xlane.xlu0 %1969
      %v1971 = vadd.f32 %v1920, %v1922
      %1972 = vadd.xlane.f32.xlu0 %v1971
      %v1973 = vpop.xlane.xlu0 %1972
      %v1974 = vadd.f32 %v1924, %v1926
      %1975 = vadd.xlane.f32.xlu0 %v1974
      %v1976 = vpop.xlane.xlu0 %1975
      %v1977 = vadd.f32 %v1928, %v1930
      %1978 = vadd.xlane.f32.xlu0 %v1977
      %v1979 = vpop.xlane.xlu0 %1978
      %v1980 = vadd.f32 %v1932, %v1934
      %1981 = vadd.xlane.f32.xlu0 %v1980
      %v1982 = vpop.xlane.xlu0 %1981
      %v1983 = vpack.c.bf16 %v1876, %v1872
      %v1984 = vpack.c.bf16 %v1878, %v1874
      %v1985 = vpack.c.bf16 %v1884, %v1880
      %v1986 = vpack.c.bf16 %v1886, %v1882
      %v1987 = vpack.c.bf16 %v1892, %v1888
      %v1988 = vpack.c.bf16 %v1894, %v1890
      %v1989 = vpack.c.bf16 %v1900, %v1896
      %v1990 = vpack.c.bf16 %v1902, %v1898
      %v1991 = vpack.c.bf16 %v1908, %v1904
      %v1992 = vpack.c.bf16 %v1910, %v1906
      %v1993 = vpack.c.bf16 %v1916, %v1912
      %v1994 = vpack.c.bf16 %v1918, %v1914
      %v1995 = vpack.c.bf16 %v1924, %v1920
      %v1996 = vpack.c.bf16 %v1926, %v1922
      %v1997 = vpack.c.bf16 %v1932, %v1928
      %v1998 = vpack.c.bf16 %v1934, %v1930
      %v1999 = vld [vmem:[#allocation4] sm:$0xf]
      %v2000 = vld [vmem:[#allocation4 + $0x4] sm:$0xf]
      %v2001 = vld [vmem:[#allocation4 + $0x8] sm:$0xf]
      %v2002 = vld [vmem:[#allocation4 + $0xc] sm:$0xf]
      %v2003 = vld [vmem:[#allocation4 + $0x10] sm:$0xf]
      %v2004 = vld [vmem:[#allocation4 + $0x14] sm:$0xf]
      %v2005 = vld [vmem:[#allocation4 + $0x18] sm:$0xf]
      %v2006 = vld [vmem:[#allocation4 + $0x1c] sm:$0xf]
      %v2007 = vld [vmem:[#allocation4 + $0x20] sm:$0xf]
      %v2008 = vld [vmem:[#allocation4 + $0x24] sm:$0xf]
      %v2009 = vld [vmem:[#allocation4 + $0x28] sm:$0xf]
      %v2010 = vld [vmem:[#allocation4 + $0x2c] sm:$0xf]
      %v2011 = vld [vmem:[#allocation4 + $0x30] sm:$0xf]
      %v2012 = vld [vmem:[#allocation4 + $0x34] sm:$0xf]
      %v2013 = vld [vmem:[#allocation4 + $0x38] sm:$0xf]
      %v2014 = vld [vmem:[#allocation4 + $0x3c] sm:$0xf]
      %v2015 = vld [vmem:[#allocation4 + $0x40] sm:$0xf]
      %v2016 = vld [vmem:[#allocation4 + $0x44] sm:$0xf]
      %v2017 = vld [vmem:[#allocation4 + $0x48] sm:$0xf]
      %v2018 = vld [vmem:[#allocation4 + $0x4c] sm:$0xf]
      %v2019 = vld [vmem:[#allocation4 + $0x50] sm:$0xf]
      %v2020 = vld [vmem:[#allocation4 + $0x54] sm:$0xf]
      %v2021 = vld [vmem:[#allocation4 + $0x58] sm:$0xf]
      %v2022 = vld [vmem:[#allocation4 + $0x5c] sm:$0xf]
      %v2023 = vld [vmem:[#allocation4 + $0x60] sm:$0xf]
      %v2024 = vld [vmem:[#allocation4 + $0x64] sm:$0xf]
      %v2025 = vld [vmem:[#allocation4 + $0x68] sm:$0xf]
      %v2026 = vld [vmem:[#allocation4 + $0x6c] sm:$0xf]
      %v2027 = vld [vmem:[#allocation4 + $0x70] sm:$0xf]
      %v2028 = vld [vmem:[#allocation4 + $0x74] sm:$0xf]
      %v2029 = vld [vmem:[#allocation4 + $0x78] sm:$0xf]
      %v2030 = vld [vmem:[#allocation4 + $0x7c] sm:$0xf]
      %v2063 = vunpack.c.l.b16 %v1999
      %v2064 = vunpack.c.l.b16 %v2000
      %v2065 = vunpack.c.l.b16 %v2001
      %v2066 = vunpack.c.l.b16 %v2002
      %v2067 = vunpack.c.l.b16 %v2003
      %v2068 = vunpack.c.l.b16 %v2004
      %v2069 = vunpack.c.l.b16 %v2005
      %v2070 = vunpack.c.l.b16 %v2006
      %v2071 = vunpack.c.l.b16 %v2007
      %v2072 = vunpack.c.l.b16 %v2008
      %v2073 = vunpack.c.l.b16 %v2009
      %v2074 = vunpack.c.l.b16 %v2010
      %v2075 = vunpack.c.l.b16 %v2011
      %v2076 = vunpack.c.l.b16 %v2012
      %v2077 = vunpack.c.l.b16 %v2013
      %v2078 = vunpack.c.l.b16 %v2014
      %v2079 = vunpack.c.l.b16 %v2015
      %v2080 = vunpack.c.l.b16 %v2016
      %v2081 = vunpack.c.l.b16 %v2017
      %v2082 = vunpack.c.l.b16 %v2018
      %v2083 = vunpack.c.l.b16 %v2019
      %v2084 = vunpack.c.l.b16 %v2020
      %v2085 = vunpack.c.l.b16 %v2021
      %v2086 = vunpack.c.l.b16 %v2022
      %v2087 = vunpack.c.l.b16 %v2023
      %v2088 = vunpack.c.l.b16 %v2024
      %v2089 = vunpack.c.l.b16 %v2025
      %v2090 = vunpack.c.l.b16 %v2026
      %v2091 = vunpack.c.l.b16 %v2027
      %v2092 = vunpack.c.l.b16 %v2028
      %v2093 = vunpack.c.l.b16 %v2029
      %v2094 = vunpack.c.l.b16 %v2030
      %v2095 = vpack.c.b16 %v2064, %v2063
      %v2096 = vpack.c.b16 %v2066, %v2065
      %v2097 = vpack.c.b16 %v2068, %v2067
      %v2098 = vpack.c.b16 %v2070, %v2069
      %v2099 = vpack.c.b16 %v2072, %v2071
      %v2100 = vpack.c.b16 %v2074, %v2073
      %v2101 = vpack.c.b16 %v2076, %v2075
      %v2102 = vpack.c.b16 %v2078, %v2077
      %v2103 = vpack.c.b16 %v2080, %v2079
      %v2104 = vpack.c.b16 %v2082, %v2081
      %v2105 = vpack.c.b16 %v2084, %v2083
      %v2106 = vpack.c.b16 %v2086, %v2085
      %v2107 = vpack.c.b16 %v2088, %v2087
      %v2108 = vpack.c.b16 %v2090, %v2089
      %v2109 = vpack.c.b16 %v2092, %v2091
      %v2110 = vpack.c.b16 %v2094, %v2093
      %2127 = vmatpush.bf16.msra.mxu0 %v2102
      %2128 = vmatpush.bf16.msra.mxu0 %v2101
      %2129 = vmatpush.bf16.msra.mxu0 %v2100
      %2130 = vmatpush.bf16.msra.mxu0 %v2099
      %2131 = vmatpush.bf16.msra.mxu0 %v2098
      %2132 = vmatpush.bf16.msra.mxu0 %v2097
      %2133 = vmatpush.bf16.msra.mxu0 %v2096
      %2134 = vmatpush.bf16.msra.mxu0 %v2095
      %2135 = vmatmul.bf16.gmra.mxu0 %v1983
      %v2136 = vpop.f32.mrf.mxu0
      %v2137 = vadd.f32 0.0, %v2136
      %v2138 = vpop.f32.mrf.mxu0
      %v2139 = vadd.f32 0.0, %v2138
      %2140 = vmatmul.bf16.gmra.mxu0 %v1985
      %v2141 = vpop.f32.mrf.mxu0
      %v2142 = vadd.f32 0.0, %v2141
      %v2143 = vpop.f32.mrf.mxu0
      %v2144 = vadd.f32 0.0, %v2143
      %2145 = vmatmul.bf16.gmra.mxu0 %v1987
      %v2146 = vpop.f32.mrf.mxu0
      %v2147 = vadd.f32 0.0, %v2146
      %v2148 = vpop.f32.mrf.mxu0
      %v2149 = vadd.f32 0.0, %v2148
      %2150 = vmatmul.bf16.gmra.mxu0 %v1989
      %v2151 = vpop.f32.mrf.mxu0
      %v2152 = vadd.f32 0.0, %v2151
      %v2153 = vpop.f32.mrf.mxu0
      %v2154 = vadd.f32 0.0, %v2153
      %2155 = vmatmul.bf16.gmra.mxu0 %v1991
      %v2156 = vpop.f32.mrf.mxu0
      %v2157 = vadd.f32 0.0, %v2156
      %v2158 = vpop.f32.mrf.mxu0
      %v2159 = vadd.f32 0.0, %v2158
      %2160 = vmatmul.bf16.gmra.mxu0 %v1993
      %v2161 = vpop.f32.mrf.mxu0
      %v2162 = vadd.f32 0.0, %v2161
      %v2163 = vpop.f32.mrf.mxu0
      %v2164 = vadd.f32 0.0, %v2163
      %2165 = vmatmul.bf16.gmra.mxu0 %v1995
      %v2166 = vpop.f32.mrf.mxu0
      %v2167 = vadd.f32 0.0, %v2166
      %v2168 = vpop.f32.mrf.mxu0
      %v2169 = vadd.f32 0.0, %v2168
      %2170 = vmatmul.bf16.gmra.mxu0 %v1997
      %v2171 = vpop.f32.mrf.mxu0
      %v2172 = vadd.f32 0.0, %v2171
      %v2173 = vpop.f32.mrf.mxu0
      %v2174 = vadd.f32 0.0, %v2173
      %2175 = vdwg.mxu0
      %2176 = vmatpush.bf16.msra.mxu0 %v2110
      %2177 = vmatpush.bf16.msra.mxu0 %v2109
      %2178 = vmatpush.bf16.msra.mxu0 %v2108
      %2179 = vmatpush.bf16.msra.mxu0 %v2107
      %2180 = vmatpush.bf16.msra.mxu0 %v2106
      %2181 = vmatpush.bf16.msra.mxu0 %v2105
      %2182 = vmatpush.bf16.msra.mxu0 %v2104
      %2183 = vmatpush.bf16.msra.mxu0 %v2103
      %2184 = vmatmul.bf16.gmra.mxu0 %v1984
      %v2185 = vpop.f32.mrf.mxu0
      %v2186 = vadd.f32 %v2137, %v2185
      %v2187 = vpop.f32.mrf.mxu0
      %v2188 = vadd.f32 %v2139, %v2187
      %2189 = vmatmul.bf16.gmra.mxu0 %v1986
      %v2190 = vpop.f32.mrf.mxu0
      %v2191 = vadd.f32 %v2142, %v2190
      %v2192 = vpop.f32.mrf.mxu0
      %v2193 = vadd.f32 %v2144, %v2192
      %2194 = vmatmul.bf16.gmra.mxu0 %v1988
      %v2195 = vpop.f32.mrf.mxu0
      %v2196 = vadd.f32 %v2147, %v2195
      %v2197 = vpop.f32.mrf.mxu0
      %v2198 = vadd.f32 %v2149, %v2197
      %2199 = vmatmul.bf16.gmra.mxu0 %v1990
      %v2200 = vpop.f32.mrf.mxu0
      %v2201 = vadd.f32 %v2152, %v2200
      %v2202 = vpop.f32.mrf.mxu0
      %v2203 = vadd.f32 %v2154, %v2202
      %2204 = vmatmul.bf16.gmra.mxu0 %v1992
      %v2205 = vpop.f32.mrf.mxu0
      %v2206 = vadd.f32 %v2157, %v2205
      %v2207 = vpop.f32.mrf.mxu0
      %v2208 = vadd.f32 %v2159, %v2207
      %2209 = vmatmul.bf16.gmra.mxu0 %v1994
      %v2210 = vpop.f32.mrf.mxu0
      %v2211 = vadd.f32 %v2162, %v2210
      %v2212 = vpop.f32.mrf.mxu0
      %v2213 = vadd.f32 %v2164, %v2212
      %2214 = vmatmul.bf16.gmra.mxu0 %v1996
      %v2215 = vpop.f32.mrf.mxu0
      %v2216 = vadd.f32 %v2167, %v2215
      %v2217 = vpop.f32.mrf.mxu0
      %v2218 = vadd.f32 %v2169, %v2217
      %2219 = vmatmul.bf16.gmra.mxu0 %v1998
      %v2220 = vpop.f32.mrf.mxu0
      %v2221 = vadd.f32 %v2172, %v2220
      %v2222 = vpop.f32.mrf.mxu0
      %v2223 = vadd.f32 %v2174, %v2222
      %2224 = vdwg.mxu0
      %v2225 = vrcp.pop %v1937
      %v2226 = vrcp.pop %v1940
      %v2227 = vrcp.pop %v1943
      %v2228 = vrcp.pop %v1946
      %v2229 = vrcp.pop %v1949
      %v2230 = vrcp.pop %v1952
      %v2231 = vrcp.pop %v1955
      %v2232 = vrcp.pop %v1958
      %v2233 = vrcp.pop %v1961
      %v2234 = vrcp.pop %v1964
      %v2235 = vrcp.pop %v1967
      %v2236 = vrcp.pop %v1970
      %v2237 = vrcp.pop %v1973
      %v2238 = vrcp.pop %v1976
      %v2239 = vrcp.pop %v1979
      %v2240 = vrcp.pop %v1982
      %v2241 = vmul.f32 %v2186, %v2225
      %v2242 = vmul.f32 %v2188, %v2226
      %v2243 = vmul.f32 %v2191, %v2227
      %v2244 = vmul.f32 %v2193, %v2228
      %v2245 = vmul.f32 %v2196, %v2229
      %v2246 = vmul.f32 %v2198, %v2230
      %v2247 = vmul.f32 %v2201, %v2231
      %v2248 = vmul.f32 %v2203, %v2232
      %v2249 = vmul.f32 %v2206, %v2233
      %v2250 = vmul.f32 %v2208, %v2234
      %v2251 = vmul.f32 %v2211, %v2235
      %v2252 = vmul.f32 %v2213, %v2236
      %v2253 = vmul.f32 %v2216, %v2237
      %v2254 = vmul.f32 %v2218, %v2238
      %v2255 = vmul.f32 %v2221, %v2239
      %v2256 = vmul.f32 %v2223, %v2240
      %v2257 = vpack.c.bf16 %v2242, %v2241
      %v2258 = vpack.c.bf16 %v2244, %v2243
      %v2259 = vpack.c.bf16 %v2246, %v2245
      %v2260 = vpack.c.bf16 %v2248, %v2247
      %v2261 = vpack.c.bf16 %v2250, %v2249
      %v2262 = vpack.c.bf16 %v2252, %v2251
      %v2263 = vpack.c.bf16 %v2254, %v2253
      %v2264 = vpack.c.bf16 %v2256, %v2255
      %v2265 = vld [vmem:[%s9] sm:$0xf]
      %v2266 = vld [vmem:[%s9 + $0x4] sm:$0xf]
      %v2267 = vld [vmem:[%s9 + $0x8] sm:$0xf]
      %v2268 = vld [vmem:[%s9 + $0xc] sm:$0xf]
      %v2269 = vld [vmem:[%s9 + $0x10] sm:$0xf]
      %v2270 = vld [vmem:[%s9 + $0x14] sm:$0xf]
      %v2271 = vld [vmem:[%s9 + $0x18] sm:$0xf]
      %v2272 = vld [vmem:[%s9 + $0x1c] sm:$0xf]
      %v2273 = vld [vmem:[%s10] sm:$0x1]
      %v2275 = vperm.slane %v2273, 0
      %v2285 = vunpack.c.l.b16 %v2265
      %v2286 = vunpack.c.l.b16 %v2266
      %v2287 = vunpack.c.l.b16 %v2267
      %v2288 = vunpack.c.l.b16 %v2268
      %v2289 = vunpack.c.l.b16 %v2269
      %v2290 = vunpack.c.l.b16 %v2270
      %v2291 = vunpack.c.l.b16 %v2271
      %v2292 = vunpack.c.l.b16 %v2272
      %v2293 = vpack.c.b16 %v2286, %v2285
      %v2294 = vpack.c.b16 %v2288, %v2287
      %v2295 = vpack.c.b16 %v2290, %v2289
      %v2296 = vpack.c.b16 %v2292, %v2291
      %v2302 = vsel %vm1620, %v2257, 0
      %v2305 = vsel %vm1620, %v2258, 0
      %v2308 = vsel %vm1620, %v2259, 0
      %v2311 = vsel %vm1620, %v2260, 0
      %v2314 = vsel %vm1620, %v2261, 0
      %v2317 = vsel %vm1620, %v2262, 0
      %v2320 = vsel %vm1620, %v2263, 0
      %v2323 = vsel %vm1620, %v2264, 0
      %2325 = vmatpush.bf16.msra.mxu0 0
      %2326 = vmatpush.bf16.msra.mxu0 0
      %2327 = vmatpush.bf16.msra.mxu0 0
      %2328 = vmatpush.bf16.msra.mxu0 0
      %2329 = vmatpush.bf16.msra.mxu0 %v2296
      %2330 = vmatpush.bf16.msra.mxu0 %v2295
      %2331 = vmatpush.bf16.msra.mxu0 %v2294
      %2332 = vmatpush.bf16.msra.mxu0 %v2293
      %2333 = vmatmul.bf16.gmra.mxu0 %v2302
      %v2334 = vpop.f32.mrf.mxu0
      %v2335 = vadd.f32 %v2275, %v2334
      %v2336 = vpop.f32.mrf.mxu0
      %v2337 = vadd.f32 %v2275, %v2336
      %2338 = vmatmul.bf16.gmra.mxu0 %v2305
      %v2339 = vpop.f32.mrf.mxu0
      %v2340 = vadd.f32 %v2275, %v2339
      %v2341 = vpop.f32.mrf.mxu0
      %v2342 = vadd.f32 %v2275, %v2341
      %2343 = vmatmul.bf16.gmra.mxu0 %v2308
      %v2344 = vpop.f32.mrf.mxu0
      %v2345 = vadd.f32 %v2275, %v2344
      %v2346 = vpop.f32.mrf.mxu0
      %v2347 = vadd.f32 %v2275, %v2346
      %2348 = vmatmul.bf16.gmra.mxu0 %v2311
      %v2349 = vpop.f32.mrf.mxu0
      %v2350 = vadd.f32 %v2275, %v2349
      %v2351 = vpop.f32.mrf.mxu0
      %v2352 = vadd.f32 %v2275, %v2351
      %2353 = vmatmul.bf16.gmra.mxu0 %v2314
      %v2354 = vpop.f32.mrf.mxu0
      %v2355 = vadd.f32 %v2275, %v2354
      %v2356 = vpop.f32.mrf.mxu0
      %v2357 = vadd.f32 %v2275, %v2356
      %2358 = vmatmul.bf16.gmra.mxu0 %v2317
      %v2359 = vpop.f32.mrf.mxu0
      %v2360 = vadd.f32 %v2275, %v2359
      %v2361 = vpop.f32.mrf.mxu0
      %v2362 = vadd.f32 %v2275, %v2361
      %2363 = vmatmul.bf16.gmra.mxu0 %v2320
      %v2364 = vpop.f32.mrf.mxu0
      %v2365 = vadd.f32 %v2275, %v2364
      %v2366 = vpop.f32.mrf.mxu0
      %v2367 = vadd.f32 %v2275, %v2366
      %2368 = vmatmul.bf16.gmra.mxu0 %v2323
      %v2369 = vpop.f32.mrf.mxu0
      %v2370 = vadd.f32 %v2275, %v2369
      %v2371 = vpop.f32.mrf.mxu0
      %v2372 = vadd.f32 %v2275, %v2371
      %2373 = vdwg.mxu0
      %s2374 = scalar_lea.vmem %s426, %s1447
      %v2375 = vld [vmem:[%s2374] sm:$0xff]
      %v2376 = vld [vmem:[%s2374 + $0x8] sm:$0xff]
      %v2377 = vld [vmem:[%s2374 + $0x10] sm:$0xff]
      %v2378 = vld [vmem:[%s2374 + $0x18] sm:$0xff]
      %v2379 = vld [vmem:[%s2374 + $0x20] sm:$0xff]
      %v2380 = vld [vmem:[%s2374 + $0x28] sm:$0xff]
      %v2381 = vld [vmem:[%s2374 + $0x30] sm:$0xff]
      %v2382 = vld [vmem:[%s2374 + $0x38] sm:$0xff]
      %v2383 = vld [vmem:[%s2374 + $0x40] sm:$0xff]
      %v2384 = vld [vmem:[%s2374 + $0x48] sm:$0xff]
      %v2385 = vld [vmem:[%s2374 + $0x50] sm:$0xff]
      %v2386 = vld [vmem:[%s2374 + $0x58] sm:$0xff]
      %v2387 = vld [vmem:[%s2374 + $0x60] sm:$0xff]
      %v2388 = vld [vmem:[%s2374 + $0x68] sm:$0xff]
      %v2389 = vld [vmem:[%s2374 + $0x70] sm:$0xff]
      %v2390 = vld [vmem:[%s2374 + $0x78] sm:$0xff]
      %v2391 = vadd.f32 %v2375, %v2335
      %v2392 = vadd.f32 %v2376, %v2337
      %v2393 = vadd.f32 %v2377, %v2340
      %v2394 = vadd.f32 %v2378, %v2342
      %v2395 = vadd.f32 %v2379, %v2345
      %v2396 = vadd.f32 %v2380, %v2347
      %v2397 = vadd.f32 %v2381, %v2350
      %v2398 = vadd.f32 %v2382, %v2352
      %v2399 = vadd.f32 %v2383, %v2355
      %v2400 = vadd.f32 %v2384, %v2357
      %v2401 = vadd.f32 %v2385, %v2360
      %v2402 = vadd.f32 %v2386, %v2362
      %v2403 = vadd.f32 %v2387, %v2365
      %v2404 = vadd.f32 %v2388, %v2367
      %v2405 = vadd.f32 %v2389, %v2370
      %v2406 = vadd.f32 %v2390, %v2372
      %2407 = vst.msk [vmem:[%s435] sm:$0xff] %vm1620, %v2391
      %2408 = vst.msk [vmem:[%s435 + $0x8] sm:$0xff] %vm1620, %v2392
      %2409 = vst.msk [vmem:[%s435 + $0x10] sm:$0xff] %vm1620, %v2393
      %2410 = vst.msk [vmem:[%s435 + $0x18] sm:$0xff] %vm1620, %v2394
      %2411 = vst.msk [vmem:[%s435 + $0x20] sm:$0xff] %vm1620, %v2395
      %2412 = vst.msk [vmem:[%s435 + $0x28] sm:$0xff] %vm1620, %v2396
      %2413 = vst.msk [vmem:[%s435 + $0x30] sm:$0xff] %vm1620, %v2397
      %2414 = vst.msk [vmem:[%s435 + $0x38] sm:$0xff] %vm1620, %v2398
      %2415 = vst.msk [vmem:[%s435 + $0x40] sm:$0xff] %vm1620, %v2399
      %2416 = vst.msk [vmem:[%s435 + $0x48] sm:$0xff] %vm1620, %v2400
      %2417 = vst.msk [vmem:[%s435 + $0x50] sm:$0xff] %vm1620, %v2401
      %2418 = vst.msk [vmem:[%s435 + $0x58] sm:$0xff] %vm1620, %v2402
      %2419 = vst.msk [vmem:[%s435 + $0x60] sm:$0xff] %vm1620, %v2403
      %2420 = vst.msk [vmem:[%s435 + $0x68] sm:$0xff] %vm1620, %v2404
      %2421 = vst.msk [vmem:[%s435 + $0x70] sm:$0xff] %vm1620, %v2405
      %2422 = vst.msk [vmem:[%s435 + $0x78] sm:$0xff] %vm1620, %v2406
      %s2423 = smul.u32 16, %s28
      %p2424 = scmp.lt.s32.totalorder %s27, 1
      %s2425 = scalar_select %p2424, %s27, 1
      %p2426 = scmp.lt.s32.totalorder %s2423, 31
      %s2427 = scalar_select %p2426, %s2423, 31
      %s2428 = smul.addr %s2425, 32
      %s2429 = sadd.s32 %s2427, %s2428
      %s2430 = smul.addr %s2429, 8
      %s2431 = scalar_lea.vmem %s12, %s2430
      // Predicated region
      $region73: #{tpu_custom_call.1} parent=67 // pred_check
        %p2432 = pneg %p312
      $region74: #{tpu_custom_call.1} parent=67 // pred_check_branch
        %2434 = sbr.rel (%p2432) target = $region76
      $region75: #{tpu_custom_call.1} parent=67 // pred_region
        %s2435 = smul.u32 16, %s28
      $region76: #{tpu_custom_call.1} parent=67 // pred_fallthru
        _
    $region68: #{tpu_custom_call.1} parent=5 // pred_fallthru
      _
    %p2436 = scmp.le.s32.totalorder 2, %s18
    // Predicated region
    $region77: #{tpu_custom_call.1} parent=5 // pred_check
      %p2437 = pneg %p2436
    $region78: #{tpu_custom_call.1} parent=5 // pred_check_branch
      %2439 = sbr.rel (%p2437) target = $region80
    $region79: #{tpu_custom_call.1} parent=5 // pred_region
      %s2440 = ssub.s32 %s18, 2
      // Predicated region
      $region81: #{tpu_custom_call.1} parent=79 // pred_check
        %p2441 = pneg %p318
      $region82: #{tpu_custom_call.1} parent=79 // pred_check_branch
        %2443 = sbr.rel (%p2441) target = $region84
      $region83: #{tpu_custom_call.1} parent=79 // pred_region
        %s2444 = smul.u32 16, %s30
        %p2445 = scmp.lt.s32.totalorder %s29, 1
        %s2446 = scalar_select %p2445, %s29, 1
        %p2447 = scmp.lt.s32.totalorder %s2444, 31
        %s2448 = scalar_select %p2447, %s2444, 31
        %s2449 = smul.addr %s2446, 32
        %s2450 = sadd.s32 %s2448, %s2449
        %s2451 = smul.addr %s2450, 8
        %s2452 = scalar_lea.vmem %s12, %s2451
      $region84: #{tpu_custom_call.1} parent=79 // pred_fallthru
        _
    $region80: #{tpu_custom_call.1} parent=5 // pred_fallthru
      _
  $region6: #{tpu_custom_call.1} parent=0 // loop_footer
    %s22 = sadd.s32 1, %s18
  $region7: #{tpu_custom_call.1} parent=0 // loop_footer_branch
    %17 = sbr.rel target = $region3
  $region8: #{tpu_custom_call.1} parent=0 // loop_exit
    _

</llo_original>
